<compile_context>
chip_gen: v6e
topology: v6e:2x2x1
jax: 0.10.0
libtpu: 0.0.40
codegen_flags: <defaults>
</compile_context>

<pallas_src>
import functools
import math

import numpy as np
import jax
import jax.numpy as jnp
from jax import lax
from jax.experimental import pallas as pl
from jax.experimental.pallas import tpu as pltpu

# ---------------- config (small, consistent with the module) ----------------
VOCAB = 100
VOCAB_PAD = 128            # embedding table padded to an MXU/lane-friendly K
HIDDEN = 32
N_LAYERS = 2
N_HEADS = 2
HEAD_DIM = HIDDEN // N_HEADS
INTERMEDIATE = 64
MAX_POS = 16
NUM_LABELS = 10
NUM_INTENTS = 5
LABEL_PAD = 128            # lane-dense token-classification head
INTENT_PAD = 128           # lane-dense intent head
LN_EPS = 1e-12
IGNORE_INDEX = -100

_VMEM = pl.BlockSpec(memory_space=pltpu.MemorySpace.VMEM)


# ------------------------------- fused kernel --------------------------------
def _fused_forward_kernel(
    # data + tiny static index helpers (constants baked by the wrapper)
    ids_ref, mask_ref, labels_ref, pos_ids_ref, bid_row_ref, bid_col_ref,
    # embeddings
    word_emb_ref, pos_emb_ref, emb_ln_g_ref, emb_ln_b_ref,
    # per-layer stacked weights (leading dim [L], wo has [L, nH, dH, H])
    wqkv_ref, bqkv_ref, wo_ref, bo_ref,
    ln1_g_ref, ln1_b_ref, w1_ref, b1_ref, w2_ref, b2_ref,
    ln2_g_ref, ln2_b_ref,
    # classification heads (lane-padded to 128)
    wc_ref, bc_ref, wi_ref, bi_ref,
    # outputs
    dst_logits_ref, intent_ref, loss_ref,
    *, B, S):
    f32 = jnp.float32
    bf16 = jnp.bfloat16
    T = B * S
    H, nH, dH = HIDDEN, N_HEADS, HEAD_DIM

    def layernorm(y, g, b):
        mu = jnp.mean(y, axis=-1, keepdims=True)
        var = jnp.mean((y - mu) * (y - mu), axis=-1, keepdims=True)
        return (y - mu) * lax.rsqrt(var + LN_EPS) * g + b

    def gelu(y):
        # TODO(synk): HF BERT uses exact erf GELU; tanh approximation used here.
        return 0.5 * y * (
            1.0 + jnp.tanh(0.7978845608028654 * (y + 0.044715 * y * y * y)))

    # ---- embeddings: one-hot matmul "gathers" (word + position) + LayerNorm -
    ids = ids_ref[...]                                                # [T,1] i32
    vocab_iota = lax.broadcasted_iota(jnp.int32, (T, VOCAB_PAD), 1)
    word_onehot = (vocab_iota == ids).astype(bf16)                    # [T,VOCAB_PAD]
    word = jnp.dot(word_onehot, word_emb_ref[...], preferred_element_type=f32)

    pos_iota = lax.broadcasted_iota(jnp.int32, (T, MAX_POS), 1)
    pos_onehot = (pos_iota == pos_ids_ref[...]).astype(bf16)          # [T,MAX_POS]
    pos_all = jnp.dot(pos_onehot, pos_emb_ref[...], preferred_element_type=f32)

    x = layernorm(word + pos_all, emb_ln_g_ref[...], emb_ln_b_ref[...])   # [T,H] f32

    # ---- additive attention bias: block-diagonal over batch + key padding ---
    same_batch = bid_row_ref[...] == bid_col_ref[...]                 # [T,T] bool
    key_valid = mask_ref[...] > 0.5                                   # [1,T] bool
    bias = jnp.where(jnp.logical_and(same_batch, key_valid), 0.0, -1e9)   # [T,T]
    scale = 1.0 / math.sqrt(dH)

    # ------------------------- transformer layers ----------------------------
    for l in range(N_LAYERS):
        # fused QKV projection: one [T,H] x [H,3H] matmul per layer
        x16 = x.astype(bf16)
        qkv = jnp.dot(x16, wqkv_ref[l], preferred_element_type=f32) + bqkv_ref[l]

        attn = jnp.zeros((T, H), f32)
        for h in range(nH):                       # static 16-lane slices of qkv
            q = qkv[:, h * dH:(h + 1) * dH]
            k = qkv[:, H + h * dH:H + (h + 1) * dH]
            v = qkv[:, 2 * H + h * dH:2 * H + (h + 1) * dH]
            s = lax.dot_general(q.astype(bf16), k.astype(bf16),
                                (((1,), (1,)), ((), ())),
                                preferred_element_type=f32)           # [T,T]
            s = s * scale + bias
            m = jnp.max(s, axis=-1, keepdims=True)
            p = jnp.exp(s - m)
            p = p * pl.reciprocal(jnp.sum(p, axis=-1, keepdims=True),
                                  approx=True)
            ctx = jnp.dot(p.astype(bf16), v.astype(bf16),
                          preferred_element_type=f32)                 # [T,dH]
            attn = attn + jnp.dot(ctx.astype(bf16), wo_ref[l, h],
                                  preferred_element_type=f32)         # [T,H]
        # residual fused into LayerNorm
        x = layernorm(x + attn + bo_ref[l], ln1_g_ref[l], ln1_b_ref[l])

        # ---- feed-forward (residual fused into LayerNorm) -------------------
        x16 = x.astype(bf16)
        hmid = gelu(jnp.dot(x16, w1_ref[l], preferred_element_type=f32)
                    + b1_ref[l])
        ffn = jnp.dot(hmid.astype(bf16), w2_ref[l],
                      preferred_element_type=f32) + b2_ref[l]
        x = layernorm(x + ffn, ln2_g_ref[l], ln2_b_ref[l])

    # ---------------- token-classification logits + CE loss ------------------
    # lane-dense [T,128] logits; padded columns carry a -1e30 bias so they are
    # inert in the log-sum-exp and never selected by real labels.
    logits = (jnp.dot(x.astype(bf16), wc_ref[...], preferred_element_type=f32)
              + bc_ref[...])                                          # [T,128]
    dst_logits_ref[...] = logits

    labels = labels_ref[...]                                          # [T,1] i32
    mlog = jnp.max(logits, axis=-1, keepdims=True)
    lse = mlog + jnp.log(jnp.sum(jnp.exp(logits - mlog), axis=-1, keepdims=True))
    lab_iota = lax.broadcasted_iota(jnp.int32, logits.shape, 1)
    picked = jnp.sum(jnp.where(lab_iota == labels, logits, 0.0),
                     axis=-1, keepdims=True)
    valid = (labels != IGNORE_INDEX).astype(f32)
    total = jnp.sum((lse - picked) * valid, axis=0, keepdims=True)    # [1,1]
    count = jnp.sum(valid, axis=0, keepdims=True)                     # [1,1]
    loss_ref[...] = total / jnp.maximum(count, 1.0)                   # guarded

    # ---------------- intent head on pooled_output (CLS tokens) --------------
    # CLS rows gathered with a tiny [B,T] one-hot selection matmul (no concat)
    sel_col = lax.broadcasted_iota(jnp.int32, (B, T), 1)
    sel_row = lax.broadcasted_iota(jnp.int32, (B, T), 0)
    cls_sel = (sel_col == sel_row * S).astype(f32)                    # [B,T]
    pooled = jnp.dot(cls_sel, x, preferred_element_type=f32)          # [B,H]
    intent_ref[...] = (jnp.dot(pooled.astype(bf16), wi_ref[...],
                               preferred_element_type=f32) + bi_ref[...])


# --------------------------- parameter init ----------------------------------
def init_params(key):
    keys = iter(jax.random.split(key, 64))

    def w(shape):
        return (0.02 * jax.random.normal(next(keys), shape)).astype(jnp.float32)

    params = {
        "word_emb": w((VOCAB, HIDDEN)),
        "pos_emb": w((MAX_POS, HIDDEN)),
        "emb_ln_g": jnp.ones((HIDDEN,), jnp.float32),
        "emb_ln_b": jnp.zeros((HIDDEN,), jnp.float32),
        "layers": [],
        "wc": w((HIDDEN, NUM_LABELS)),
        "bc": jnp.zeros((NUM_LABELS,), jnp.float32),
        "wi": w((HIDDEN, NUM_INTENTS)),
        "bi": jnp.zeros((NUM_INTENTS,), jnp.float32),
    }
    for _ in range(N_LAYERS):
        params["layers"].append({
            "wq": w((HIDDEN, HIDDEN)), "bq": jnp.zeros((HIDDEN,), jnp.float32),
            "wk": w((HIDDEN, HIDDEN)), "bk": jnp.zeros((HIDDEN,), jnp.float32),
            "wv": w((HIDDEN, HIDDEN)), "bv": jnp.zeros((HIDDEN,), jnp.float32),
            "wo": w((HIDDEN, HIDDEN)), "bo": jnp.zeros((HIDDEN,), jnp.float32),
            "ln1_g": jnp.ones((HIDDEN,), jnp.float32),
            "ln1_b": jnp.zeros((HIDDEN,), jnp.float32),
            "w1": w((HIDDEN, INTERMEDIATE)),
            "b1": jnp.zeros((INTERMEDIATE,), jnp.float32),
            "w2": w((INTERMEDIATE, HIDDEN)),
            "b2": jnp.zeros((HIDDEN,), jnp.float32),
            "ln2_g": jnp.ones((HIDDEN,), jnp.float32),
            "ln2_b": jnp.zeros((HIDDEN,), jnp.float32),
        })
    return params


def pack_params(p):
    """Called ONCE at init (not per-call).  Stacks per-layer params, fuses the
    QKV weights, bf16-casts all matmul weights and lane-pads the heads so the
    kernel needs only leading-dim indexing and static lane slices."""
    L, H, nH, dH, I = N_LAYERS, HIDDEN, N_HEADS, HEAD_DIM, INTERMEDIATE
    bf16 = jnp.bfloat16

    def stack(name):
        return jnp.stack([lyr[name] for lyr in p["layers"]])

    word_pad = jnp.zeros((VOCAB_PAD, H), jnp.float32).at[:VOCAB, :].set(p["word_emb"])

    wqkv = jnp.concatenate(
        [jnp.stack([lyr[n] for lyr in p["layers"]]) for n in ("wq", "wk", "wv")],
        axis=2)                                                        # [L,H,3H]
    bqkv = jnp.concatenate(
        [jnp.stack([lyr[n] for lyr in p["layers"]]) for n in ("bq", "bk", "bv")],
        axis=1).reshape(L, 1, 3 * H)                                   # [L,1,3H]

    # token-classification head: pad to 128 lanes, padded columns biased -1e30
    wc_pad = jnp.zeros((H, LABEL_PAD), jnp.float32).at[:, :NUM_LABELS].set(p["wc"])
    bc_pad = jnp.full((1, LABEL_PAD), -1e30, jnp.float32).at[0, :NUM_LABELS].set(p["bc"])
    # intent head: pad to 128 lanes (sliced off in the wrapper)
    wi_pad = jnp.zeros((H, INTENT_PAD), jnp.float32).at[:, :NUM_INTENTS].set(p["wi"])
    bi_pad = jnp.zeros((1, INTENT_PAD), jnp.float32).at[0, :NUM_INTENTS].set(p["bi"])

    packed = {
        "word_emb": word_pad.astype(bf16),
        "pos_emb": p["pos_emb"].astype(bf16),
        "emb_ln_g": p["emb_ln_g"].reshape(1, H),
        "emb_ln_b": p["emb_ln_b"].reshape(1, H),
        "wqkv": wqkv.astype(bf16),                                     # [L,H,3H]
        "bqkv": bqkv,                                                  # [L,1,3H] f32
        "wo": stack("wo").reshape(L, nH, dH, H).astype(bf16),          # [L,nH,dH,H]
        "bo": stack("bo").reshape(L, 1, H),
        "ln1_g": stack("ln1_g").reshape(L, 1, H),
        "ln1_b": stack("ln1_b").reshape(L, 1, H),
        "w1": stack("w1").astype(bf16),                                # [L,H,I]
        "b1": stack("b1").reshape(L, 1, I),
        "w2": stack("w2").astype(bf16),                                # [L,I,H]
        "b2": stack("b2").reshape(L, 1, H),
        "ln2_g": stack("ln2_g").reshape(L, 1, H),
        "ln2_b": stack("ln2_b").reshape(L, 1, H),
        "wc": wc_pad.astype(bf16), "bc": bc_pad,
        "wi": wi_pad.astype(bf16), "bi": bi_pad,
    }
    return jax.tree_util.tree_map(jax.device_put, packed)


# ------------------------------ forward --------------------------------------
@jax.jit
def joint_atis_forward(packed, input_ids, attention_mask, labels):
    B, S = input_ids.shape
    T = B * S

    ids_flat = input_ids.reshape(T, 1).astype(jnp.int32)
    labels_flat = labels.reshape(T, 1).astype(jnp.int32)
    mask_f = attention_mask.reshape(1, T).astype(jnp.float32)

    # tiny static index helpers -> jit constants (no per-call compute)
    pos_ids = jnp.asarray(np.tile(np.arange(S, dtype=np.int32), B).reshape(T, 1))
    bid_row = jnp.asarray(np.repeat(np.arange(B, dtype=np.int32), S).reshape(T, 1))
    bid_col = jnp.asarray(np.repeat(np.arange(B, dtype=np.int32), S).reshape(1, T))

    args = (
        ids_flat, mask_f, labels_flat, pos_ids, bid_row, bid_col,
        packed["word_emb"], packed["pos_emb"],
        packed["emb_ln_g"], packed["emb_ln_b"],
        packed["wqkv"], packed["bqkv"], packed["wo"], packed["bo"],
        packed["ln1_g"], packed["ln1_b"], packed["w1"], packed["b1"],
        packed["w2"], packed["b2"], packed["ln2_g"], packed["ln2_b"],
        packed["wc"], packed["bc"], packed["wi"], packed["bi"],
    )

    kernel = functools.partial(_fused_forward_kernel, B=B, S=S)
    dst_logits_pad, intent_pad, loss = pl.pallas_call(
        kernel,
        out_shape=(
            jax.ShapeDtypeStruct((T, LABEL_PAD), jnp.float32),
            jax.ShapeDtypeStruct((B, INTENT_PAD), jnp.float32),
            jax.ShapeDtypeStruct((1, 1), jnp.float32),
        ),
        in_specs=[_VMEM] * len(args),
        out_specs=(_VMEM, _VMEM, _VMEM),
    )(*args)

    # (key 'intent_loss' actually carries the intent logits, as in the module)
    return {
        "dst_logits": dst_logits_pad[:, :NUM_LABELS].reshape(B, S, NUM_LABELS),
        "intent_loss": intent_pad[:, :NUM_INTENTS],
        "dst_loss": loss[0, 0],
    }


# -------------------------------- main ----------------------------------------
if __name__ == "__main__":
    key = jax.random.PRNGKey(0)
    pkey, ikey, lkey = jax.random.split(key, 3)

    B, S = 2, 8
    params = init_params(pkey)
    packed = pack_params(params)          # packed ONCE; reused across calls

    input_ids = jax.random.randint(ikey, (B, S), 0, VOCAB, dtype=jnp.int32)
    attention_mask = jnp.ones((B, S), jnp.int32).at[1, 6:].set(0)      # pad tail of row 1
    labels = jax.random.randint(lkey, (B, S), 0, NUM_LABELS, dtype=jnp.int32)
    labels = jnp.where(attention_mask == 1, labels, IGNORE_INDEX)      # ignore padded

    out = joint_atis_forward(packed, input_ids, attention_mask, labels)
    jax.block_until_ready(out)

    assert out["dst_logits"].shape == (B, S, NUM_LABELS)
    assert out["intent_loss"].shape == (B, NUM_INTENTS)
    assert out["dst_loss"].shape == ()
    assert bool(jnp.isfinite(out["dst_loss"]))
    assert bool(jnp.all(jnp.isfinite(out["dst_logits"])))
    assert bool(jnp.all(jnp.isfinite(out["intent_loss"])))

    print("KERNEL_OK")
</pallas_src>

<mosaic_0001>
module attributes {stable_mosaic.version = 11 : i64} {
  func.func @_fused_forward_kernel(%arg0: memref<16x1xi32, #tpu.memory_space<vmem>>, %arg1: memref<1x16xf32, #tpu.memory_space<vmem>>, %arg2: memref<16x1xi32, #tpu.memory_space<vmem>>, %arg3: memref<16x1xi32, #tpu.memory_space<vmem>>, %arg4: memref<16x1xi32, #tpu.memory_space<vmem>>, %arg5: memref<1x16xi32, #tpu.memory_space<vmem>>, %arg6: memref<128x32xbf16, #tpu.memory_space<vmem>>, %arg7: memref<16x32xbf16, #tpu.memory_space<vmem>>, %arg8: memref<1x32xf32, #tpu.memory_space<vmem>>, %arg9: memref<1x32xf32, #tpu.memory_space<vmem>>, %arg10: memref<2x32x96xbf16, #tpu.memory_space<vmem>>, %arg11: memref<2x1x96xf32, #tpu.memory_space<vmem>>, %arg12: memref<2x2x16x32xbf16, #tpu.memory_space<vmem>>, %arg13: memref<2x1x32xf32, #tpu.memory_space<vmem>>, %arg14: memref<2x1x32xf32, #tpu.memory_space<vmem>>, %arg15: memref<2x1x32xf32, #tpu.memory_space<vmem>>, %arg16: memref<2x32x64xbf16, #tpu.memory_space<vmem>>, %arg17: memref<2x1x64xf32, #tpu.memory_space<vmem>>, %arg18: memref<2x64x32xbf16, #tpu.memory_space<vmem>>, %arg19: memref<2x1x32xf32, #tpu.memory_space<vmem>>, %arg20: memref<2x1x32xf32, #tpu.memory_space<vmem>>, %arg21: memref<2x1x32xf32, #tpu.memory_space<vmem>>, %arg22: memref<32x128xbf16, #tpu.memory_space<vmem>>, %arg23: memref<1x128xf32, #tpu.memory_space<vmem>>, %arg24: memref<32x128xbf16, #tpu.memory_space<vmem>>, %arg25: memref<1x128xf32, #tpu.memory_space<vmem>>, %arg26: memref<16x128xf32, #tpu.memory_space<vmem>>, %arg27: memref<2x128xf32, #tpu.memory_space<vmem>>, %arg28: memref<1x1xf32, #tpu.memory_space<vmem>>) attributes {dimension_semantics = [], scalar_prefetch = 0 : i64, scratch_operands = 0 : i64, tpu.core_type = #tpu.core_type<tc>} {
    %c0 = arith.constant 0 : index
    %c0_0 = arith.constant 0 : index
    %0 = vector.load %arg0[%c0, %c0_0] : memref<16x1xi32, #tpu.memory_space<vmem>>, vector<16x1xi32>
    %1 = tpu.iota {dimensions = array<i32: 1>} : vector<16x128xi32>
    %2 = vector.broadcast %0 : vector<16x1xi32> to vector<16x128xi32>
    %3 = arith.cmpi eq, %1, %2 : vector<16x128xi32>
    %4 = arith.extui %3 : vector<16x128xi1> to vector<16x128xi32>
    %5 = arith.sitofp %4 : vector<16x128xi32> to vector<16x128xf32>
    %6 = arith.truncf %5 : vector<16x128xf32> to vector<16x128xbf16>
    %c0_1 = arith.constant 0 : index
    %c0_2 = arith.constant 0 : index
    %7 = vector.load %arg6[%c0_1, %c0_2] : memref<128x32xbf16, #tpu.memory_space<vmem>>, vector<128x32xbf16>
    %cst = arith.constant dense<0.000000e+00> : vector<16x32xf32>
    %8 = tpu.matmul %6, %7, %cst {dimension_numbers = #tpu.dot_dimension_numbers<[1], [0], [0], [1], [0, 0, 1, 1], [], []>} : vector<16x128xbf16>, vector<128x32xbf16>, vector<16x32xf32> -> vector<16x32xf32>
    %9 = tpu.iota {dimensions = array<i32: 1>} : vector<16x16xi32>
    %c0_3 = arith.constant 0 : index
    %c0_4 = arith.constant 0 : index
    %10 = vector.load %arg3[%c0_3, %c0_4] : memref<16x1xi32, #tpu.memory_space<vmem>>, vector<16x1xi32>
    %11 = vector.broadcast %10 : vector<16x1xi32> to vector<16x16xi32>
    %12 = arith.cmpi eq, %9, %11 : vector<16x16xi32>
    %13 = arith.extui %12 : vector<16x16xi1> to vector<16x16xi32>
    %14 = arith.sitofp %13 : vector<16x16xi32> to vector<16x16xf32>
    %15 = arith.truncf %14 : vector<16x16xf32> to vector<16x16xbf16>
    %c0_5 = arith.constant 0 : index
    %c0_6 = arith.constant 0 : index
    %16 = vector.load %arg7[%c0_5, %c0_6] : memref<16x32xbf16, #tpu.memory_space<vmem>>, vector<16x32xbf16>
    %cst_7 = arith.constant dense<0.000000e+00> : vector<16x32xf32>
    %17 = tpu.matmul %15, %16, %cst_7 {dimension_numbers = #tpu.dot_dimension_numbers<[1], [0], [0], [1], [0, 0, 1, 1], [], []>} : vector<16x16xbf16>, vector<16x32xbf16>, vector<16x32xf32> -> vector<16x32xf32>
    %18 = arith.addf %8, %17 : vector<16x32xf32>
    %c0_8 = arith.constant 0 : index
    %c0_9 = arith.constant 0 : index
    %19 = vector.load %arg8[%c0_8, %c0_9] : memref<1x32xf32, #tpu.memory_space<vmem>>, vector<1x32xf32>
    %c0_10 = arith.constant 0 : index
    %c0_11 = arith.constant 0 : index
    %20 = vector.load %arg9[%c0_10, %c0_11] : memref<1x32xf32, #tpu.memory_space<vmem>>, vector<1x32xf32>
    %cst_12 = arith.constant dense<0.000000e+00> : vector<16xf32>
    %21 = vector.multi_reduction <add>, %18, %cst_12 [1] : vector<16x32xf32> to vector<16xf32>
    %22 = vector.shape_cast %21 : vector<16xf32> to vector<16x1xf32>
    %cst_13 = arith.constant 3.200000e+01 : f32
    %23 = vector.broadcast %cst_13 : f32 to vector<16x1xf32>
    %24 = arith.divf %22, %23 : vector<16x1xf32>
    %25 = vector.broadcast %24 : vector<16x1xf32> to vector<16x32xf32>
    %26 = arith.subf %18, %25 : vector<16x32xf32>
    %27 = vector.broadcast %24 : vector<16x1xf32> to vector<16x32xf32>
    %28 = arith.subf %18, %27 : vector<16x32xf32>
    %29 = arith.mulf %26, %28 : vector<16x32xf32>
    %cst_14 = arith.constant dense<0.000000e+00> : vector<16xf32>
    %30 = vector.multi_reduction <add>, %29, %cst_14 [1] : vector<16x32xf32> to vector<16xf32>
    %31 = vector.shape_cast %30 : vector<16xf32> to vector<16x1xf32>
    %cst_15 = arith.constant 3.200000e+01 : f32
    %32 = vector.broadcast %cst_15 : f32 to vector<16x1xf32>
    %33 = arith.divf %31, %32 : vector<16x1xf32>
    %34 = vector.broadcast %24 : vector<16x1xf32> to vector<16x32xf32>
    %35 = arith.subf %18, %34 : vector<16x32xf32>
    %cst_16 = arith.constant 9.99999996E-13 : f32
    %36 = vector.broadcast %cst_16 : f32 to vector<16x1xf32>
    %37 = arith.addf %33, %36 : vector<16x1xf32>
    %38 = math.rsqrt %37 : vector<16x1xf32>
    %39 = vector.broadcast %38 : vector<16x1xf32> to vector<16x32xf32>
    %40 = arith.mulf %35, %39 : vector<16x32xf32>
    %41 = vector.broadcast %19 : vector<1x32xf32> to vector<16x32xf32>
    %42 = arith.mulf %40, %41 : vector<16x32xf32>
    %43 = vector.broadcast %20 : vector<1x32xf32> to vector<16x32xf32>
    %44 = arith.addf %42, %43 : vector<16x32xf32>
    %c0_17 = arith.constant 0 : index
    %c0_18 = arith.constant 0 : index
    %45 = vector.load %arg4[%c0_17, %c0_18] : memref<16x1xi32, #tpu.memory_space<vmem>>, vector<16x1xi32>
    %c0_19 = arith.constant 0 : index
    %c0_20 = arith.constant 0 : index
    %46 = vector.load %arg5[%c0_19, %c0_20] : memref<1x16xi32, #tpu.memory_space<vmem>>, vector<1x16xi32>
    %47 = vector.broadcast %45 : vector<16x1xi32> to vector<16x16xi32>
    %48 = vector.broadcast %46 : vector<1x16xi32> to vector<16x16xi32>
    %49 = arith.cmpi eq, %47, %48 : vector<16x16xi32>
    %c0_21 = arith.constant 0 : index
    %c0_22 = arith.constant 0 : index
    %50 = vector.load %arg1[%c0_21, %c0_22] : memref<1x16xf32, #tpu.memory_space<vmem>>, vector<1x16xf32>
    %cst_23 = arith.constant 5.000000e-01 : f32
    %51 = vector.broadcast %cst_23 : f32 to vector<1x16xf32>
    %52 = arith.cmpf ogt, %50, %51 : vector<1x16xf32>
    %53 = vector.broadcast %52 : vector<1x16xi1> to vector<16x16xi1>
    %54 = arith.andi %49, %53 : vector<16x16xi1>
    %cst_24 = arith.constant 0.000000e+00 : f32
    %cst_25 = arith.constant -1.000000e+09 : f32
    %55 = vector.broadcast %cst_24 : f32 to vector<16x16xf32>
    %56 = vector.broadcast %cst_25 : f32 to vector<16x16xf32>
    %57 = arith.select %54, %55, %56 : vector<16x16xi1>, vector<16x16xf32>
    %58 = arith.truncf %44 : vector<16x32xf32> to vector<16x32xbf16>
    %c0_26 = arith.constant 0 : index
    %c0_27 = arith.constant 0 : index
    %c0_28 = arith.constant 0 : index
    %59 = vector.load %arg10[%c0_26, %c0_27, %c0_28] : memref<2x32x96xbf16, #tpu.memory_space<vmem>>, vector<1x32x96xbf16>
    %60 = vector.shape_cast %59 : vector<1x32x96xbf16> to vector<32x96xbf16>
    %cst_29 = arith.constant dense<0.000000e+00> : vector<16x96xf32>
    %61 = tpu.matmul %58, %60, %cst_29 {dimension_numbers = #tpu.dot_dimension_numbers<[1], [0], [0], [1], [0, 0, 1, 1], [], []>} : vector<16x32xbf16>, vector<32x96xbf16>, vector<16x96xf32> -> vector<16x96xf32>
    %c0_30 = arith.constant 0 : index
    %c0_31 = arith.constant 0 : index
    %c0_32 = arith.constant 0 : index
    %62 = vector.load %arg11[%c0_30, %c0_31, %c0_32] : memref<2x1x96xf32, #tpu.memory_space<vmem>>, vector<1x1x96xf32>
    %63 = vector.shape_cast %62 : vector<1x1x96xf32> to vector<1x96xf32>
    %64 = vector.broadcast %63 : vector<1x96xf32> to vector<16x96xf32>
    %65 = arith.addf %61, %64 : vector<16x96xf32>
    %cst_33 = arith.constant 0.000000e+00 : f32
    %66 = vector.broadcast %cst_33 : f32 to vector<16x32xf32>
    %67 = vector.extract_strided_slice %65 {offsets = [0, 0], sizes = [16, 16], strides = [1, 1]} : vector<16x96xf32> to vector<16x16xf32>
    %68 = vector.extract_strided_slice %65 {offsets = [0, 32], sizes = [16, 16], strides = [1, 1]} : vector<16x96xf32> to vector<16x16xf32>
    %69 = vector.extract_strided_slice %65 {offsets = [0, 64], sizes = [16, 16], strides = [1, 1]} : vector<16x96xf32> to vector<16x16xf32>
    %70 = arith.truncf %67 : vector<16x16xf32> to vector<16x16xbf16>
    %71 = arith.truncf %68 : vector<16x16xf32> to vector<16x16xbf16>
    %cst_34 = arith.constant dense<0.000000e+00> : vector<16x16xf32>
    %72 = tpu.matmul %70, %71, %cst_34 {dimension_numbers = #tpu.dot_dimension_numbers<[1], [1], [0], [0], [0, 0, 1, 0], [], []>} : vector<16x16xbf16>, vector<16x16xbf16>, vector<16x16xf32> -> vector<16x16xf32>
    %cst_35 = arith.constant 2.500000e-01 : f32
    %73 = vector.broadcast %cst_35 : f32 to vector<16x16xf32>
    %74 = arith.mulf %72, %73 : vector<16x16xf32>
    %75 = arith.addf %74, %57 : vector<16x16xf32>
    %cst_36 = arith.constant dense<0xFF800000> : vector<16xf32>
    %76 = vector.multi_reduction <maximumf>, %75, %cst_36 [1] : vector<16x16xf32> to vector<16xf32>
    %77 = vector.shape_cast %76 : vector<16xf32> to vector<16x1xf32>
    %78 = vector.broadcast %77 : vector<16x1xf32> to vector<16x16xf32>
    %79 = arith.subf %75, %78 : vector<16x16xf32>
    %80 = math.exp %79 : vector<16x16xf32>
    %cst_37 = arith.constant dense<0.000000e+00> : vector<16xf32>
    %81 = vector.multi_reduction <add>, %80, %cst_37 [1] : vector<16x16xf32> to vector<16xf32>
    %82 = vector.shape_cast %81 : vector<16xf32> to vector<16x1xf32>
    %83 = tpu.reciprocal %82 {approx = true} : vector<16x1xf32> -> vector<16x1xf32>
    %84 = vector.broadcast %83 : vector<16x1xf32> to vector<16x16xf32>
    %85 = arith.mulf %80, %84 : vector<16x16xf32>
    %86 = arith.truncf %85 : vector<16x16xf32> to vector<16x16xbf16>
    %87 = arith.truncf %69 : vector<16x16xf32> to vector<16x16xbf16>
    %cst_38 = arith.constant dense<0.000000e+00> : vector<16x16xf32>
    %88 = tpu.matmul %86, %87, %cst_38 {dimension_numbers = #tpu.dot_dimension_numbers<[1], [0], [0], [1], [0, 0, 1, 1], [], []>} : vector<16x16xbf16>, vector<16x16xbf16>, vector<16x16xf32> -> vector<16x16xf32>
    %89 = arith.truncf %88 : vector<16x16xf32> to vector<16x16xbf16>
    %c0_39 = arith.constant 0 : index
    %c0_40 = arith.constant 0 : index
    %c0_41 = arith.constant 0 : index
    %c0_42 = arith.constant 0 : index
    %90 = vector.load %arg12[%c0_39, %c0_40, %c0_41, %c0_42] : memref<2x2x16x32xbf16, #tpu.memory_space<vmem>>, vector<1x1x16x32xbf16>
    %91 = vector.shape_cast %90 : vector<1x1x16x32xbf16> to vector<16x32xbf16>
    %cst_43 = arith.constant dense<0.000000e+00> : vector<16x32xf32>
    %92 = tpu.matmul %89, %91, %cst_43 {dimension_numbers = #tpu.dot_dimension_numbers<[1], [0], [0], [1], [0, 0, 1, 1], [], []>} : vector<16x16xbf16>, vector<16x32xbf16>, vector<16x32xf32> -> vector<16x32xf32>
    %93 = arith.addf %66, %92 : vector<16x32xf32>
    %94 = vector.extract_strided_slice %65 {offsets = [0, 16], sizes = [16, 16], strides = [1, 1]} : vector<16x96xf32> to vector<16x16xf32>
    %95 = vector.extract_strided_slice %65 {offsets = [0, 48], sizes = [16, 16], strides = [1, 1]} : vector<16x96xf32> to vector<16x16xf32>
    %96 = vector.extract_strided_slice %65 {offsets = [0, 80], sizes = [16, 16], strides = [1, 1]} : vector<16x96xf32> to vector<16x16xf32>
    %97 = arith.truncf %94 : vector<16x16xf32> to vector<16x16xbf16>
    %98 = arith.truncf %95 : vector<16x16xf32> to vector<16x16xbf16>
    %cst_44 = arith.constant dense<0.000000e+00> : vector<16x16xf32>
    %99 = tpu.matmul %97, %98, %cst_44 {dimension_numbers = #tpu.dot_dimension_numbers<[1], [1], [0], [0], [0, 0, 1, 0], [], []>} : vector<16x16xbf16>, vector<16x16xbf16>, vector<16x16xf32> -> vector<16x16xf32>
    %cst_45 = arith.constant 2.500000e-01 : f32
    %100 = vector.broadcast %cst_45 : f32 to vector<16x16xf32>
    %101 = arith.mulf %99, %100 : vector<16x16xf32>
    %102 = arith.addf %101, %57 : vector<16x16xf32>
    %cst_46 = arith.constant dense<0xFF800000> : vector<16xf32>
    %103 = vector.multi_reduction <maximumf>, %102, %cst_46 [1] : vector<16x16xf32> to vector<16xf32>
    %104 = vector.shape_cast %103 : vector<16xf32> to vector<16x1xf32>
    %105 = vector.broadcast %104 : vector<16x1xf32> to vector<16x16xf32>
    %106 = arith.subf %102, %105 : vector<16x16xf32>
    %107 = math.exp %106 : vector<16x16xf32>
    %cst_47 = arith.constant dense<0.000000e+00> : vector<16xf32>
    %108 = vector.multi_reduction <add>, %107, %cst_47 [1] : vector<16x16xf32> to vector<16xf32>
    %109 = vector.shape_cast %108 : vector<16xf32> to vector<16x1xf32>
    %110 = tpu.reciprocal %109 {approx = true} : vector<16x1xf32> -> vector<16x1xf32>
    %111 = vector.broadcast %110 : vector<16x1xf32> to vector<16x16xf32>
    %112 = arith.mulf %107, %111 : vector<16x16xf32>
    %113 = arith.truncf %112 : vector<16x16xf32> to vector<16x16xbf16>
    %114 = arith.truncf %96 : vector<16x16xf32> to vector<16x16xbf16>
    %cst_48 = arith.constant dense<0.000000e+00> : vector<16x16xf32>
    %115 = tpu.matmul %113, %114, %cst_48 {dimension_numbers = #tpu.dot_dimension_numbers<[1], [0], [0], [1], [0, 0, 1, 1], [], []>} : vector<16x16xbf16>, vector<16x16xbf16>, vector<16x16xf32> -> vector<16x16xf32>
    %116 = arith.truncf %115 : vector<16x16xf32> to vector<16x16xbf16>
    %c0_49 = arith.constant 0 : index
    %c1 = arith.constant 1 : index
    %c0_50 = arith.constant 0 : index
    %c0_51 = arith.constant 0 : index
    %117 = vector.load %arg12[%c0_49, %c1, %c0_50, %c0_51] : memref<2x2x16x32xbf16, #tpu.memory_space<vmem>>, vector<1x1x16x32xbf16>
    %118 = vector.shape_cast %117 : vector<1x1x16x32xbf16> to vector<16x32xbf16>
    %cst_52 = arith.constant dense<0.000000e+00> : vector<16x32xf32>
    %119 = tpu.matmul %116, %118, %cst_52 {dimension_numbers = #tpu.dot_dimension_numbers<[1], [0], [0], [1], [0, 0, 1, 1], [], []>} : vector<16x16xbf16>, vector<16x32xbf16>, vector<16x32xf32> -> vector<16x32xf32>
    %120 = arith.addf %93, %119 : vector<16x32xf32>
    %121 = arith.addf %44, %120 : vector<16x32xf32>
    %c0_53 = arith.constant 0 : index
    %c0_54 = arith.constant 0 : index
    %c0_55 = arith.constant 0 : index
    %122 = vector.load %arg13[%c0_53, %c0_54, %c0_55] : memref<2x1x32xf32, #tpu.memory_space<vmem>>, vector<1x1x32xf32>
    %123 = vector.shape_cast %122 : vector<1x1x32xf32> to vector<1x32xf32>
    %124 = vector.broadcast %123 : vector<1x32xf32> to vector<16x32xf32>
    %125 = arith.addf %121, %124 : vector<16x32xf32>
    %c0_56 = arith.constant 0 : index
    %c0_57 = arith.constant 0 : index
    %c0_58 = arith.constant 0 : index
    %126 = vector.load %arg14[%c0_56, %c0_57, %c0_58] : memref<2x1x32xf32, #tpu.memory_space<vmem>>, vector<1x1x32xf32>
    %127 = vector.shape_cast %126 : vector<1x1x32xf32> to vector<1x32xf32>
    %c0_59 = arith.constant 0 : index
    %c0_60 = arith.constant 0 : index
    %c0_61 = arith.constant 0 : index
    %128 = vector.load %arg15[%c0_59, %c0_60, %c0_61] : memref<2x1x32xf32, #tpu.memory_space<vmem>>, vector<1x1x32xf32>
    %129 = vector.shape_cast %128 : vector<1x1x32xf32> to vector<1x32xf32>
    %cst_62 = arith.constant dense<0.000000e+00> : vector<16xf32>
    %130 = vector.multi_reduction <add>, %125, %cst_62 [1] : vector<16x32xf32> to vector<16xf32>
    %131 = vector.shape_cast %130 : vector<16xf32> to vector<16x1xf32>
    %cst_63 = arith.constant 3.200000e+01 : f32
    %132 = vector.broadcast %cst_63 : f32 to vector<16x1xf32>
    %133 = arith.divf %131, %132 : vector<16x1xf32>
    %134 = vector.broadcast %133 : vector<16x1xf32> to vector<16x32xf32>
    %135 = arith.subf %125, %134 : vector<16x32xf32>
    %136 = vector.broadcast %133 : vector<16x1xf32> to vector<16x32xf32>
    %137 = arith.subf %125, %136 : vector<16x32xf32>
    %138 = arith.mulf %135, %137 : vector<16x32xf32>
    %cst_64 = arith.constant dense<0.000000e+00> : vector<16xf32>
    %139 = vector.multi_reduction <add>, %138, %cst_64 [1] : vector<16x32xf32> to vector<16xf32>
    %140 = vector.shape_cast %139 : vector<16xf32> to vector<16x1xf32>
    %cst_65 = arith.constant 3.200000e+01 : f32
    %141 = vector.broadcast %cst_65 : f32 to vector<16x1xf32>
    %142 = arith.divf %140, %141 : vector<16x1xf32>
    %143 = vector.broadcast %133 : vector<16x1xf32> to vector<16x32xf32>
    %144 = arith.subf %125, %143 : vector<16x32xf32>
    %cst_66 = arith.constant 9.99999996E-13 : f32
    %145 = vector.broadcast %cst_66 : f32 to vector<16x1xf32>
    %146 = arith.addf %142, %145 : vector<16x1xf32>
    %147 = math.rsqrt %146 : vector<16x1xf32>
    %148 = vector.broadcast %147 : vector<16x1xf32> to vector<16x32xf32>
    %149 = arith.mulf %144, %148 : vector<16x32xf32>
    %150 = vector.broadcast %127 : vector<1x32xf32> to vector<16x32xf32>
    %151 = arith.mulf %149, %150 : vector<16x32xf32>
    %152 = vector.broadcast %129 : vector<1x32xf32> to vector<16x32xf32>
    %153 = arith.addf %151, %152 : vector<16x32xf32>
    %154 = arith.truncf %153 : vector<16x32xf32> to vector<16x32xbf16>
    %c0_67 = arith.constant 0 : index
    %c0_68 = arith.constant 0 : index
    %c0_69 = arith.constant 0 : index
    %155 = vector.load %arg16[%c0_67, %c0_68, %c0_69] : memref<2x32x64xbf16, #tpu.memory_space<vmem>>, vector<1x32x64xbf16>
    %156 = vector.shape_cast %155 : vector<1x32x64xbf16> to vector<32x64xbf16>
    %cst_70 = arith.constant dense<0.000000e+00> : vector<16x64xf32>
    %157 = tpu.matmul %154, %156, %cst_70 {dimension_numbers = #tpu.dot_dimension_numbers<[1], [0], [0], [1], [0, 0, 1, 1], [], []>} : vector<16x32xbf16>, vector<32x64xbf16>, vector<16x64xf32> -> vector<16x64xf32>
    %c0_71 = arith.constant 0 : index
    %c0_72 = arith.constant 0 : index
    %c0_73 = arith.constant 0 : index
    %158 = vector.load %arg17[%c0_71, %c0_72, %c0_73] : memref<2x1x64xf32, #tpu.memory_space<vmem>>, vector<1x1x64xf32>
    %159 = vector.shape_cast %158 : vector<1x1x64xf32> to vector<1x64xf32>
    %160 = vector.broadcast %159 : vector<1x64xf32> to vector<16x64xf32>
    %161 = arith.addf %157, %160 : vector<16x64xf32>
    %cst_74 = arith.constant 5.000000e-01 : f32
    %162 = vector.broadcast %cst_74 : f32 to vector<16x64xf32>
    %163 = arith.mulf %162, %161 : vector<16x64xf32>
    %cst_75 = arith.constant 4.471500e-02 : f32
    %164 = vector.broadcast %cst_75 : f32 to vector<16x64xf32>
    %165 = arith.mulf %164, %161 : vector<16x64xf32>
    %166 = arith.mulf %165, %161 : vector<16x64xf32>
    %167 = arith.mulf %166, %161 : vector<16x64xf32>
    %168 = arith.addf %161, %167 : vector<16x64xf32>
    %cst_76 = arith.constant 0.797884583 : f32
    %169 = vector.broadcast %cst_76 : f32 to vector<16x64xf32>
    %170 = arith.mulf %169, %168 : vector<16x64xf32>
    %171 = math.tanh %170 : vector<16x64xf32>
    %cst_77 = arith.constant 1.000000e+00 : f32
    %172 = vector.broadcast %cst_77 : f32 to vector<16x64xf32>
    %173 = arith.addf %172, %171 : vector<16x64xf32>
    %174 = arith.mulf %163, %173 : vector<16x64xf32>
    %175 = arith.truncf %174 : vector<16x64xf32> to vector<16x64xbf16>
    %c0_78 = arith.constant 0 : index
    %c0_79 = arith.constant 0 : index
    %c0_80 = arith.constant 0 : index
    %176 = vector.load %arg18[%c0_78, %c0_79, %c0_80] : memref<2x64x32xbf16, #tpu.memory_space<vmem>>, vector<1x64x32xbf16>
    %177 = vector.shape_cast %176 : vector<1x64x32xbf16> to vector<64x32xbf16>
    %cst_81 = arith.constant dense<0.000000e+00> : vector<16x32xf32>
    %178 = tpu.matmul %175, %177, %cst_81 {dimension_numbers = #tpu.dot_dimension_numbers<[1], [0], [0], [1], [0, 0, 1, 1], [], []>} : vector<16x64xbf16>, vector<64x32xbf16>, vector<16x32xf32> -> vector<16x32xf32>
    %c0_82 = arith.constant 0 : index
    %c0_83 = arith.constant 0 : index
    %c0_84 = arith.constant 0 : index
    %179 = vector.load %arg19[%c0_82, %c0_83, %c0_84] : memref<2x1x32xf32, #tpu.memory_space<vmem>>, vector<1x1x32xf32>
    %180 = vector.shape_cast %179 : vector<1x1x32xf32> to vector<1x32xf32>
    %181 = vector.broadcast %180 : vector<1x32xf32> to vector<16x32xf32>
    %182 = arith.addf %178, %181 : vector<16x32xf32>
    %183 = arith.addf %153, %182 : vector<16x32xf32>
    %c0_85 = arith.constant 0 : index
    %c0_86 = arith.constant 0 : index
    %c0_87 = arith.constant 0 : index
    %184 = vector.load %arg20[%c0_85, %c0_86, %c0_87] : memref<2x1x32xf32, #tpu.memory_space<vmem>>, vector<1x1x32xf32>
    %185 = vector.shape_cast %184 : vector<1x1x32xf32> to vector<1x32xf32>
    %c0_88 = arith.constant 0 : index
    %c0_89 = arith.constant 0 : index
    %c0_90 = arith.constant 0 : index
    %186 = vector.load %arg21[%c0_88, %c0_89, %c0_90] : memref<2x1x32xf32, #tpu.memory_space<vmem>>, vector<1x1x32xf32>
    %187 = vector.shape_cast %186 : vector<1x1x32xf32> to vector<1x32xf32>
    %cst_91 = arith.constant dense<0.000000e+00> : vector<16xf32>
    %188 = vector.multi_reduction <add>, %183, %cst_91 [1] : vector<16x32xf32> to vector<16xf32>
    %189 = vector.shape_cast %188 : vector<16xf32> to vector<16x1xf32>
    %cst_92 = arith.constant 3.200000e+01 : f32
    %190 = vector.broadcast %cst_92 : f32 to vector<16x1xf32>
    %191 = arith.divf %189, %190 : vector<16x1xf32>
    %192 = vector.broadcast %191 : vector<16x1xf32> to vector<16x32xf32>
    %193 = arith.subf %183, %192 : vector<16x32xf32>
    %194 = vector.broadcast %191 : vector<16x1xf32> to vector<16x32xf32>
    %195 = arith.subf %183, %194 : vector<16x32xf32>
    %196 = arith.mulf %193, %195 : vector<16x32xf32>
    %cst_93 = arith.constant dense<0.000000e+00> : vector<16xf32>
    %197 = vector.multi_reduction <add>, %196, %cst_93 [1] : vector<16x32xf32> to vector<16xf32>
    %198 = vector.shape_cast %197 : vector<16xf32> to vector<16x1xf32>
    %cst_94 = arith.constant 3.200000e+01 : f32
    %199 = vector.broadcast %cst_94 : f32 to vector<16x1xf32>
    %200 = arith.divf %198, %199 : vector<16x1xf32>
    %201 = vector.broadcast %191 : vector<16x1xf32> to vector<16x32xf32>
    %202 = arith.subf %183, %201 : vector<16x32xf32>
    %cst_95 = arith.constant 9.99999996E-13 : f32
    %203 = vector.broadcast %cst_95 : f32 to vector<16x1xf32>
    %204 = arith.addf %200, %203 : vector<16x1xf32>
    %205 = math.rsqrt %204 : vector<16x1xf32>
    %206 = vector.broadcast %205 : vector<16x1xf32> to vector<16x32xf32>
    %207 = arith.mulf %202, %206 : vector<16x32xf32>
    %208 = vector.broadcast %185 : vector<1x32xf32> to vector<16x32xf32>
    %209 = arith.mulf %207, %208 : vector<16x32xf32>
    %210 = vector.broadcast %187 : vector<1x32xf32> to vector<16x32xf32>
    %211 = arith.addf %209, %210 : vector<16x32xf32>
    %212 = arith.truncf %211 : vector<16x32xf32> to vector<16x32xbf16>
    %c1_96 = arith.constant 1 : index
    %c0_97 = arith.constant 0 : index
    %c0_98 = arith.constant 0 : index
    %213 = vector.load %arg10[%c1_96, %c0_97, %c0_98] : memref<2x32x96xbf16, #tpu.memory_space<vmem>>, vector<1x32x96xbf16>
    %214 = vector.shape_cast %213 : vector<1x32x96xbf16> to vector<32x96xbf16>
    %cst_99 = arith.constant dense<0.000000e+00> : vector<16x96xf32>
    %215 = tpu.matmul %212, %214, %cst_99 {dimension_numbers = #tpu.dot_dimension_numbers<[1], [0], [0], [1], [0, 0, 1, 1], [], []>} : vector<16x32xbf16>, vector<32x96xbf16>, vector<16x96xf32> -> vector<16x96xf32>
    %c1_100 = arith.constant 1 : index
    %c0_101 = arith.constant 0 : index
    %c0_102 = arith.constant 0 : index
    %216 = vector.load %arg11[%c1_100, %c0_101, %c0_102] : memref<2x1x96xf32, #tpu.memory_space<vmem>>, vector<1x1x96xf32>
    %217 = vector.shape_cast %216 : vector<1x1x96xf32> to vector<1x96xf32>
    %218 = vector.broadcast %217 : vector<1x96xf32> to vector<16x96xf32>
    %219 = arith.addf %215, %218 : vector<16x96xf32>
    %cst_103 = arith.constant 0.000000e+00 : f32
    %220 = vector.broadcast %cst_103 : f32 to vector<16x32xf32>
    %221 = vector.extract_strided_slice %219 {offsets = [0, 0], sizes = [16, 16], strides = [1, 1]} : vector<16x96xf32> to vector<16x16xf32>
    %222 = vector.extract_strided_slice %219 {offsets = [0, 32], sizes = [16, 16], strides = [1, 1]} : vector<16x96xf32> to vector<16x16xf32>
    %223 = vector.extract_strided_slice %219 {offsets = [0, 64], sizes = [16, 16], strides = [1, 1]} : vector<16x96xf32> to vector<16x16xf32>
    %224 = arith.truncf %221 : vector<16x16xf32> to vector<16x16xbf16>
    %225 = arith.truncf %222 : vector<16x16xf32> to vector<16x16xbf16>
    %cst_104 = arith.constant dense<0.000000e+00> : vector<16x16xf32>
    %226 = tpu.matmul %224, %225, %cst_104 {dimension_numbers = #tpu.dot_dimension_numbers<[1], [1], [0], [0], [0, 0, 1, 0], [], []>} : vector<16x16xbf16>, vector<16x16xbf16>, vector<16x16xf32> -> vector<16x16xf32>
    %cst_105 = arith.constant 2.500000e-01 : f32
    %227 = vector.broadcast %cst_105 : f32 to vector<16x16xf32>
    %228 = arith.mulf %226, %227 : vector<16x16xf32>
    %229 = arith.addf %228, %57 : vector<16x16xf32>
    %cst_106 = arith.constant dense<0xFF800000> : vector<16xf32>
    %230 = vector.multi_reduction <maximumf>, %229, %cst_106 [1] : vector<16x16xf32> to vector<16xf32>
    %231 = vector.shape_cast %230 : vector<16xf32> to vector<16x1xf32>
    %232 = vector.broadcast %231 : vector<16x1xf32> to vector<16x16xf32>
    %233 = arith.subf %229, %232 : vector<16x16xf32>
    %234 = math.exp %233 : vector<16x16xf32>
    %cst_107 = arith.constant dense<0.000000e+00> : vector<16xf32>
    %235 = vector.multi_reduction <add>, %234, %cst_107 [1] : vector<16x16xf32> to vector<16xf32>
    %236 = vector.shape_cast %235 : vector<16xf32> to vector<16x1xf32>
    %237 = tpu.reciprocal %236 {approx = true} : vector<16x1xf32> -> vector<16x1xf32>
    %238 = vector.broadcast %237 : vector<16x1xf32> to vector<16x16xf32>
    %239 = arith.mulf %234, %238 : vector<16x16xf32>
    %240 = arith.truncf %239 : vector<16x16xf32> to vector<16x16xbf16>
    %241 = arith.truncf %223 : vector<16x16xf32> to vector<16x16xbf16>
    %cst_108 = arith.constant dense<0.000000e+00> : vector<16x16xf32>
    %242 = tpu.matmul %240, %241, %cst_108 {dimension_numbers = #tpu.dot_dimension_numbers<[1], [0], [0], [1], [0, 0, 1, 1], [], []>} : vector<16x16xbf16>, vector<16x16xbf16>, vector<16x16xf32> -> vector<16x16xf32>
    %243 = arith.truncf %242 : vector<16x16xf32> to vector<16x16xbf16>
    %c1_109 = arith.constant 1 : index
    %c0_110 = arith.constant 0 : index
    %c0_111 = arith.constant 0 : index
    %c0_112 = arith.constant 0 : index
    %244 = vector.load %arg12[%c1_109, %c0_110, %c0_111, %c0_112] : memref<2x2x16x32xbf16, #tpu.memory_space<vmem>>, vector<1x1x16x32xbf16>
    %245 = vector.shape_cast %244 : vector<1x1x16x32xbf16> to vector<16x32xbf16>
    %cst_113 = arith.constant dense<0.000000e+00> : vector<16x32xf32>
    %246 = tpu.matmul %243, %245, %cst_113 {dimension_numbers = #tpu.dot_dimension_numbers<[1], [0], [0], [1], [0, 0, 1, 1], [], []>} : vector<16x16xbf16>, vector<16x32xbf16>, vector<16x32xf32> -> vector<16x32xf32>
    %247 = arith.addf %220, %246 : vector<16x32xf32>
    %248 = vector.extract_strided_slice %219 {offsets = [0, 16], sizes = [16, 16], strides = [1, 1]} : vector<16x96xf32> to vector<16x16xf32>
    %249 = vector.extract_strided_slice %219 {offsets = [0, 48], sizes = [16, 16], strides = [1, 1]} : vector<16x96xf32> to vector<16x16xf32>
    %250 = vector.extract_strided_slice %219 {offsets = [0, 80], sizes = [16, 16], strides = [1, 1]} : vector<16x96xf32> to vector<16x16xf32>
    %251 = arith.truncf %248 : vector<16x16xf32> to vector<16x16xbf16>
    %252 = arith.truncf %249 : vector<16x16xf32> to vector<16x16xbf16>
    %cst_114 = arith.constant dense<0.000000e+00> : vector<16x16xf32>
    %253 = tpu.matmul %251, %252, %cst_114 {dimension_numbers = #tpu.dot_dimension_numbers<[1], [1], [0], [0], [0, 0, 1, 0], [], []>} : vector<16x16xbf16>, vector<16x16xbf16>, vector<16x16xf32> -> vector<16x16xf32>
    %cst_115 = arith.constant 2.500000e-01 : f32
    %254 = vector.broadcast %cst_115 : f32 to vector<16x16xf32>
    %255 = arith.mulf %253, %254 : vector<16x16xf32>
    %256 = arith.addf %255, %57 : vector<16x16xf32>
    %cst_116 = arith.constant dense<0xFF800000> : vector<16xf32>
    %257 = vector.multi_reduction <maximumf>, %256, %cst_116 [1] : vector<16x16xf32> to vector<16xf32>
    %258 = vector.shape_cast %257 : vector<16xf32> to vector<16x1xf32>
    %259 = vector.broadcast %258 : vector<16x1xf32> to vector<16x16xf32>
    %260 = arith.subf %256, %259 : vector<16x16xf32>
    %261 = math.exp %260 : vector<16x16xf32>
    %cst_117 = arith.constant dense<0.000000e+00> : vector<16xf32>
    %262 = vector.multi_reduction <add>, %261, %cst_117 [1] : vector<16x16xf32> to vector<16xf32>
    %263 = vector.shape_cast %262 : vector<16xf32> to vector<16x1xf32>
    %264 = tpu.reciprocal %263 {approx = true} : vector<16x1xf32> -> vector<16x1xf32>
    %265 = vector.broadcast %264 : vector<16x1xf32> to vector<16x16xf32>
    %266 = arith.mulf %261, %265 : vector<16x16xf32>
    %267 = arith.truncf %266 : vector<16x16xf32> to vector<16x16xbf16>
    %268 = arith.truncf %250 : vector<16x16xf32> to vector<16x16xbf16>
    %cst_118 = arith.constant dense<0.000000e+00> : vector<16x16xf32>
    %269 = tpu.matmul %267, %268, %cst_118 {dimension_numbers = #tpu.dot_dimension_numbers<[1], [0], [0], [1], [0, 0, 1, 1], [], []>} : vector<16x16xbf16>, vector<16x16xbf16>, vector<16x16xf32> -> vector<16x16xf32>
    %270 = arith.truncf %269 : vector<16x16xf32> to vector<16x16xbf16>
    %c1_119 = arith.constant 1 : index
    %c1_120 = arith.constant 1 : index
    %c0_121 = arith.constant 0 : index
    %c0_122 = arith.constant 0 : index
    %271 = vector.load %arg12[%c1_119, %c1_120, %c0_121, %c0_122] : memref<2x2x16x32xbf16, #tpu.memory_space<vmem>>, vector<1x1x16x32xbf16>
    %272 = vector.shape_cast %271 : vector<1x1x16x32xbf16> to vector<16x32xbf16>
    %cst_123 = arith.constant dense<0.000000e+00> : vector<16x32xf32>
    %273 = tpu.matmul %270, %272, %cst_123 {dimension_numbers = #tpu.dot_dimension_numbers<[1], [0], [0], [1], [0, 0, 1, 1], [], []>} : vector<16x16xbf16>, vector<16x32xbf16>, vector<16x32xf32> -> vector<16x32xf32>
    %274 = arith.addf %247, %273 : vector<16x32xf32>
    %275 = arith.addf %211, %274 : vector<16x32xf32>
    %c1_124 = arith.constant 1 : index
    %c0_125 = arith.constant 0 : index
    %c0_126 = arith.constant 0 : index
    %276 = vector.load %arg13[%c1_124, %c0_125, %c0_126] : memref<2x1x32xf32, #tpu.memory_space<vmem>>, vector<1x1x32xf32>
    %277 = vector.shape_cast %276 : vector<1x1x32xf32> to vector<1x32xf32>
    %278 = vector.broadcast %277 : vector<1x32xf32> to vector<16x32xf32>
    %279 = arith.addf %275, %278 : vector<16x32xf32>
    %c1_127 = arith.constant 1 : index
    %c0_128 = arith.constant 0 : index
    %c0_129 = arith.constant 0 : index
    %280 = vector.load %arg14[%c1_127, %c0_128, %c0_129] : memref<2x1x32xf32, #tpu.memory_space<vmem>>, vector<1x1x32xf32>
    %281 = vector.shape_cast %280 : vector<1x1x32xf32> to vector<1x32xf32>
    %c1_130 = arith.constant 1 : index
    %c0_131 = arith.constant 0 : index
    %c0_132 = arith.constant 0 : index
    %282 = vector.load %arg15[%c1_130, %c0_131, %c0_132] : memref<2x1x32xf32, #tpu.memory_space<vmem>>, vector<1x1x32xf32>
    %283 = vector.shape_cast %282 : vector<1x1x32xf32> to vector<1x32xf32>
    %cst_133 = arith.constant dense<0.000000e+00> : vector<16xf32>
    %284 = vector.multi_reduction <add>, %279, %cst_133 [1] : vector<16x32xf32> to vector<16xf32>
    %285 = vector.shape_cast %284 : vector<16xf32> to vector<16x1xf32>
    %cst_134 = arith.constant 3.200000e+01 : f32
    %286 = vector.broadcast %cst_134 : f32 to vector<16x1xf32>
    %287 = arith.divf %285, %286 : vector<16x1xf32>
    %288 = vector.broadcast %287 : vector<16x1xf32> to vector<16x32xf32>
    %289 = arith.subf %279, %288 : vector<16x32xf32>
    %290 = vector.broadcast %287 : vector<16x1xf32> to vector<16x32xf32>
    %291 = arith.subf %279, %290 : vector<16x32xf32>
    %292 = arith.mulf %289, %291 : vector<16x32xf32>
    %cst_135 = arith.constant dense<0.000000e+00> : vector<16xf32>
    %293 = vector.multi_reduction <add>, %292, %cst_135 [1] : vector<16x32xf32> to vector<16xf32>
    %294 = vector.shape_cast %293 : vector<16xf32> to vector<16x1xf32>
    %cst_136 = arith.constant 3.200000e+01 : f32
    %295 = vector.broadcast %cst_136 : f32 to vector<16x1xf32>
    %296 = arith.divf %294, %295 : vector<16x1xf32>
    %297 = vector.broadcast %287 : vector<16x1xf32> to vector<16x32xf32>
    %298 = arith.subf %279, %297 : vector<16x32xf32>
    %cst_137 = arith.constant 9.99999996E-13 : f32
    %299 = vector.broadcast %cst_137 : f32 to vector<16x1xf32>
    %300 = arith.addf %296, %299 : vector<16x1xf32>
    %301 = math.rsqrt %300 : vector<16x1xf32>
    %302 = vector.broadcast %301 : vector<16x1xf32> to vector<16x32xf32>
    %303 = arith.mulf %298, %302 : vector<16x32xf32>
    %304 = vector.broadcast %281 : vector<1x32xf32> to vector<16x32xf32>
    %305 = arith.mulf %303, %304 : vector<16x32xf32>
    %306 = vector.broadcast %283 : vector<1x32xf32> to vector<16x32xf32>
    %307 = arith.addf %305, %306 : vector<16x32xf32>
    %308 = arith.truncf %307 : vector<16x32xf32> to vector<16x32xbf16>
    %c1_138 = arith.constant 1 : index
    %c0_139 = arith.constant 0 : index
    %c0_140 = arith.constant 0 : index
    %309 = vector.load %arg16[%c1_138, %c0_139, %c0_140] : memref<2x32x64xbf16, #tpu.memory_space<vmem>>, vector<1x32x64xbf16>
    %310 = vector.shape_cast %309 : vector<1x32x64xbf16> to vector<32x64xbf16>
    %cst_141 = arith.constant dense<0.000000e+00> : vector<16x64xf32>
    %311 = tpu.matmul %308, %310, %cst_141 {dimension_numbers = #tpu.dot_dimension_numbers<[1], [0], [0], [1], [0, 0, 1, 1], [], []>} : vector<16x32xbf16>, vector<32x64xbf16>, vector<16x64xf32> -> vector<16x64xf32>
    %c1_142 = arith.constant 1 : index
    %c0_143 = arith.constant 0 : index
    %c0_144 = arith.constant 0 : index
    %312 = vector.load %arg17[%c1_142, %c0_143, %c0_144] : memref<2x1x64xf32, #tpu.memory_space<vmem>>, vector<1x1x64xf32>
    %313 = vector.shape_cast %312 : vector<1x1x64xf32> to vector<1x64xf32>
    %314 = vector.broadcast %313 : vector<1x64xf32> to vector<16x64xf32>
    %315 = arith.addf %311, %314 : vector<16x64xf32>
    %cst_145 = arith.constant 5.000000e-01 : f32
    %316 = vector.broadcast %cst_145 : f32 to vector<16x64xf32>
    %317 = arith.mulf %316, %315 : vector<16x64xf32>
    %cst_146 = arith.constant 4.471500e-02 : f32
    %318 = vector.broadcast %cst_146 : f32 to vector<16x64xf32>
    %319 = arith.mulf %318, %315 : vector<16x64xf32>
    %320 = arith.mulf %319, %315 : vector<16x64xf32>
    %321 = arith.mulf %320, %315 : vector<16x64xf32>
    %322 = arith.addf %315, %321 : vector<16x64xf32>
    %cst_147 = arith.constant 0.797884583 : f32
    %323 = vector.broadcast %cst_147 : f32 to vector<16x64xf32>
    %324 = arith.mulf %323, %322 : vector<16x64xf32>
    %325 = math.tanh %324 : vector<16x64xf32>
    %cst_148 = arith.constant 1.000000e+00 : f32
    %326 = vector.broadcast %cst_148 : f32 to vector<16x64xf32>
    %327 = arith.addf %326, %325 : vector<16x64xf32>
    %328 = arith.mulf %317, %327 : vector<16x64xf32>
    %329 = arith.truncf %328 : vector<16x64xf32> to vector<16x64xbf16>
    %c1_149 = arith.constant 1 : index
    %c0_150 = arith.constant 0 : index
    %c0_151 = arith.constant 0 : index
    %330 = vector.load %arg18[%c1_149, %c0_150, %c0_151] : memref<2x64x32xbf16, #tpu.memory_space<vmem>>, vector<1x64x32xbf16>
    %331 = vector.shape_cast %330 : vector<1x64x32xbf16> to vector<64x32xbf16>
    %cst_152 = arith.constant dense<0.000000e+00> : vector<16x32xf32>
    %332 = tpu.matmul %329, %331, %cst_152 {dimension_numbers = #tpu.dot_dimension_numbers<[1], [0], [0], [1], [0, 0, 1, 1], [], []>} : vector<16x64xbf16>, vector<64x32xbf16>, vector<16x32xf32> -> vector<16x32xf32>
    %c1_153 = arith.constant 1 : index
    %c0_154 = arith.constant 0 : index
    %c0_155 = arith.constant 0 : index
    %333 = vector.load %arg19[%c1_153, %c0_154, %c0_155] : memref<2x1x32xf32, #tpu.memory_space<vmem>>, vector<1x1x32xf32>
    %334 = vector.shape_cast %333 : vector<1x1x32xf32> to vector<1x32xf32>
    %335 = vector.broadcast %334 : vector<1x32xf32> to vector<16x32xf32>
    %336 = arith.addf %332, %335 : vector<16x32xf32>
    %337 = arith.addf %307, %336 : vector<16x32xf32>
    %c1_156 = arith.constant 1 : index
    %c0_157 = arith.constant 0 : index
    %c0_158 = arith.constant 0 : index
    %338 = vector.load %arg20[%c1_156, %c0_157, %c0_158] : memref<2x1x32xf32, #tpu.memory_space<vmem>>, vector<1x1x32xf32>
    %339 = vector.shape_cast %338 : vector<1x1x32xf32> to vector<1x32xf32>
    %c1_159 = arith.constant 1 : index
    %c0_160 = arith.constant 0 : index
    %c0_161 = arith.constant 0 : index
    %340 = vector.load %arg21[%c1_159, %c0_160, %c0_161] : memref<2x1x32xf32, #tpu.memory_space<vmem>>, vector<1x1x32xf32>
    %341 = vector.shape_cast %340 : vector<1x1x32xf32> to vector<1x32xf32>
    %cst_162 = arith.constant dense<0.000000e+00> : vector<16xf32>
    %342 = vector.multi_reduction <add>, %337, %cst_162 [1] : vector<16x32xf32> to vector<16xf32>
    %343 = vector.shape_cast %342 : vector<16xf32> to vector<16x1xf32>
    %cst_163 = arith.constant 3.200000e+01 : f32
    %344 = vector.broadcast %cst_163 : f32 to vector<16x1xf32>
    %345 = arith.divf %343, %344 : vector<16x1xf32>
    %346 = vector.broadcast %345 : vector<16x1xf32> to vector<16x32xf32>
    %347 = arith.subf %337, %346 : vector<16x32xf32>
    %348 = vector.broadcast %345 : vector<16x1xf32> to vector<16x32xf32>
    %349 = arith.subf %337, %348 : vector<16x32xf32>
    %350 = arith.mulf %347, %349 : vector<16x32xf32>
    %cst_164 = arith.constant dense<0.000000e+00> : vector<16xf32>
    %351 = vector.multi_reduction <add>, %350, %cst_164 [1] : vector<16x32xf32> to vector<16xf32>
    %352 = vector.shape_cast %351 : vector<16xf32> to vector<16x1xf32>
    %cst_165 = arith.constant 3.200000e+01 : f32
    %353 = vector.broadcast %cst_165 : f32 to vector<16x1xf32>
    %354 = arith.divf %352, %353 : vector<16x1xf32>
    %355 = vector.broadcast %345 : vector<16x1xf32> to vector<16x32xf32>
    %356 = arith.subf %337, %355 : vector<16x32xf32>
    %cst_166 = arith.constant 9.99999996E-13 : f32
    %357 = vector.broadcast %cst_166 : f32 to vector<16x1xf32>
    %358 = arith.addf %354, %357 : vector<16x1xf32>
    %359 = math.rsqrt %358 : vector<16x1xf32>
    %360 = vector.broadcast %359 : vector<16x1xf32> to vector<16x32xf32>
    %361 = arith.mulf %356, %360 : vector<16x32xf32>
    %362 = vector.broadcast %339 : vector<1x32xf32> to vector<16x32xf32>
    %363 = arith.mulf %361, %362 : vector<16x32xf32>
    %364 = vector.broadcast %341 : vector<1x32xf32> to vector<16x32xf32>
    %365 = arith.addf %363, %364 : vector<16x32xf32>
    %366 = arith.truncf %365 : vector<16x32xf32> to vector<16x32xbf16>
    %c0_167 = arith.constant 0 : index
    %c0_168 = arith.constant 0 : index
    %367 = vector.load %arg22[%c0_167, %c0_168] : memref<32x128xbf16, #tpu.memory_space<vmem>>, vector<32x128xbf16>
    %cst_169 = arith.constant dense<0.000000e+00> : vector<16x128xf32>
    %368 = tpu.matmul %366, %367, %cst_169 {dimension_numbers = #tpu.dot_dimension_numbers<[1], [0], [0], [1], [0, 0, 1, 1], [], []>} : vector<16x32xbf16>, vector<32x128xbf16>, vector<16x128xf32> -> vector<16x128xf32>
    %c0_170 = arith.constant 0 : index
    %c0_171 = arith.constant 0 : index
    %369 = vector.load %arg23[%c0_170, %c0_171] : memref<1x128xf32, #tpu.memory_space<vmem>>, vector<1x128xf32>
    %370 = vector.broadcast %369 : vector<1x128xf32> to vector<16x128xf32>
    %371 = arith.addf %368, %370 : vector<16x128xf32>
    %c0_172 = arith.constant 0 : index
    %c0_173 = arith.constant 0 : index
    %372 = vector.load %arg26[%c0_172, %c0_173] : memref<16x128xf32, #tpu.memory_space<vmem>>, vector<16x128xf32>
    tpu.vector_store %arg26[%c0_172, %c0_173], %371 {strides = array<i32>} : memref<16x128xf32, #tpu.memory_space<vmem>>, vector<16x128xf32>,
    %c0_174 = arith.constant 0 : index
    %c0_175 = arith.constant 0 : index
    %373 = vector.load %arg2[%c0_174, %c0_175] : memref<16x1xi32, #tpu.memory_space<vmem>>, vector<16x1xi32>
    %cst_176 = arith.constant dense<0xFF800000> : vector<16xf32>
    %374 = vector.multi_reduction <maximumf>, %371, %cst_176 [1] : vector<16x128xf32> to vector<16xf32>
    %375 = vector.shape_cast %374 : vector<16xf32> to vector<16x1xf32>
    %376 = vector.broadcast %375 : vector<16x1xf32> to vector<16x128xf32>
    %377 = arith.subf %371, %376 : vector<16x128xf32>
    %378 = math.exp %377 : vector<16x128xf32>
    %cst_177 = arith.constant dense<0.000000e+00> : vector<16xf32>
    %379 = vector.multi_reduction <add>, %378, %cst_177 [1] : vector<16x128xf32> to vector<16xf32>
    %380 = vector.shape_cast %379 : vector<16xf32> to vector<16x1xf32>
    %381 = math.log %380 : vector<16x1xf32>
    %382 = arith.addf %375, %381 : vector<16x1xf32>
    %383 = tpu.iota {dimensions = array<i32: 1>} : vector<16x128xi32>
    %384 = vector.broadcast %373 : vector<16x1xi32> to vector<16x128xi32>
    %385 = arith.cmpi eq, %383, %384 : vector<16x128xi32>
    %cst_178 = arith.constant 0.000000e+00 : f32
    %386 = vector.broadcast %cst_178 : f32 to vector<16x128xf32>
    %387 = arith.select %385, %371, %386 : vector<16x128xi1>, vector<16x128xf32>
    %cst_179 = arith.constant dense<0.000000e+00> : vector<16xf32>
    %388 = vector.multi_reduction <add>, %387, %cst_179 [1] : vector<16x128xf32> to vector<16xf32>
    %389 = vector.shape_cast %388 : vector<16xf32> to vector<16x1xf32>
    %c-100_i32 = arith.constant -100 : i32
    %390 = vector.broadcast %c-100_i32 : i32 to vector<16x1xi32>
    %391 = arith.cmpi ne, %373, %390 : vector<16x1xi32>
    %392 = arith.extui %391 : vector<16x1xi1> to vector<16x1xi32>
    %393 = arith.sitofp %392 : vector<16x1xi32> to vector<16x1xf32>
    %394 = arith.subf %382, %389 : vector<16x1xf32>
    %395 = arith.mulf %394, %393 : vector<16x1xf32>
    %cst_180 = arith.constant dense<0.000000e+00> : vector<1xf32>
    %396 = vector.multi_reduction <add>, %395, %cst_180 [0] : vector<16x1xf32> to vector<1xf32>
    %397 = vector.shape_cast %396 : vector<1xf32> to vector<1x1xf32>
    %cst_181 = arith.constant dense<0.000000e+00> : vector<1xf32>
    %398 = vector.multi_reduction <add>, %393, %cst_181 [0] : vector<16x1xf32> to vector<1xf32>
    %399 = vector.shape_cast %398 : vector<1xf32> to vector<1x1xf32>
    %cst_182 = arith.constant 1.000000e+00 : f32
    %400 = vector.broadcast %cst_182 : f32 to vector<1x1xf32>
    %401 = arith.maximumf %399, %400 : vector<1x1xf32>
    %402 = arith.divf %397, %401 : vector<1x1xf32>
    %c0_183 = arith.constant 0 : index
    %c0_184 = arith.constant 0 : index
    %403 = vector.load %arg28[%c0_183, %c0_184] : memref<1x1xf32, #tpu.memory_space<vmem>>, vector<1x1xf32>
    tpu.vector_store %arg28[%c0_183, %c0_184], %402 {strides = array<i32>} : memref<1x1xf32, #tpu.memory_space<vmem>>, vector<1x1xf32>,
    %404 = tpu.iota {dimensions = array<i32: 1>} : vector<2x16xi32>
    %405 = tpu.iota {dimensions = array<i32: 0>} : vector<2x16xi32>
    %c8_i32 = arith.constant 8 : i32
    %406 = vector.broadcast %c8_i32 : i32 to vector<2x16xi32>
    %407 = arith.muli %405, %406 : vector<2x16xi32>
    %408 = arith.cmpi eq, %404, %407 : vector<2x16xi32>
    %409 = arith.extui %408 : vector<2x16xi1> to vector<2x16xi32>
    %410 = arith.sitofp %409 : vector<2x16xi32> to vector<2x16xf32>
    %cst_185 = arith.constant dense<0.000000e+00> : vector<2x32xf32>
    %411 = tpu.matmul %410, %365, %cst_185 {dimension_numbers = #tpu.dot_dimension_numbers<[1], [0], [0], [1], [0, 0, 1, 1], [], []>} : vector<2x16xf32>, vector<16x32xf32>, vector<2x32xf32> -> vector<2x32xf32>
    %412 = arith.truncf %411 : vector<2x32xf32> to vector<2x32xbf16>
    %c0_186 = arith.constant 0 : index
    %c0_187 = arith.constant 0 : index
    %413 = vector.load %arg24[%c0_186, %c0_187] : memref<32x128xbf16, #tpu.memory_space<vmem>>, vector<32x128xbf16>
    %cst_188 = arith.constant dense<0.000000e+00> : vector<2x128xf32>
    %414 = tpu.matmul %412, %413, %cst_188 {dimension_numbers = #tpu.dot_dimension_numbers<[1], [0], [0], [1], [0, 0, 1, 1], [], []>} : vector<2x32xbf16>, vector<32x128xbf16>, vector<2x128xf32> -> vector<2x128xf32>
    %c0_189 = arith.constant 0 : index
    %c0_190 = arith.constant 0 : index
    %415 = vector.load %arg25[%c0_189, %c0_190] : memref<1x128xf32, #tpu.memory_space<vmem>>, vector<1x128xf32>
    %416 = vector.broadcast %415 : vector<1x128xf32> to vector<2x128xf32>
    %417 = arith.addf %414, %416 : vector<2x128xf32>
    %c0_191 = arith.constant 0 : index
    %c0_192 = arith.constant 0 : index
    %418 = vector.load %arg27[%c0_191, %c0_192] : memref<2x128xf32, #tpu.memory_space<vmem>>, vector<2x128xf32>
    tpu.vector_store %arg27[%c0_191, %c0_192], %417 {strides = array<i32>} : memref<2x128xf32, #tpu.memory_space<vmem>>, vector<2x128xf32>,
    return
  }
}

</mosaic_0001>

<llo_original>
// kernel: joint_atis_forward.1
$region0: #{joint_atis_forward.1}
  #allocation0 [shape = 'u32[]', space=smem, size = 0x4, offset = 0x4, fixed_abs, tag = 'smem constant byte address 0x4 - core index']
  #allocation1 [shape = 'u32[144,128]{1,0:T(1,128)}', space=vmem, size = 0x12000, scoped, tag = 'internal scratch']
  %s0 = inlined_call_operand.vmem [shape: s32[16,1], index: 0, kind: input, shape index: {}]
  %s1 = inlined_call_operand.vmem [shape: f32[1,16], index: 1, kind: input, shape index: {}]
  %s2 = inlined_call_operand.vmem [shape: s32[16,1], index: 2, kind: input, shape index: {}]
  %s3 = inlined_call_operand.vmem [shape: s32[16,1], index: 3, kind: input, shape index: {}]
  %s4 = inlined_call_operand.vmem [shape: s32[16,1], index: 4, kind: input, shape index: {}]
  %s5 = inlined_call_operand.vmem [shape: s32[1,16], index: 5, kind: input, shape index: {}]
  %s6 = inlined_call_operand.vmem [shape: bf16[128,32], index: 6, kind: input, shape index: {}]
  %s7 = inlined_call_operand.vmem [shape: bf16[16,32], index: 7, kind: input, shape index: {}]
  %s8 = inlined_call_operand.vmem [shape: f32[1,32], index: 8, kind: input, shape index: {}]
  %s9 = inlined_call_operand.vmem [shape: f32[1,32], index: 9, kind: input, shape index: {}]
  %s10 = inlined_call_operand.vmem [shape: bf16[2,32,96], index: 10, kind: input, shape index: {}]
  %s11 = inlined_call_operand.vmem [shape: f32[2,1,96], index: 11, kind: input, shape index: {}]
  %s12 = inlined_call_operand.vmem [shape: bf16[2,2,16,32], index: 12, kind: input, shape index: {}]
  %s13 = inlined_call_operand.vmem [shape: f32[2,1,32], index: 13, kind: input, shape index: {}]
  %s14 = inlined_call_operand.vmem [shape: f32[2,1,32], index: 14, kind: input, shape index: {}]
  %s15 = inlined_call_operand.vmem [shape: f32[2,1,32], index: 15, kind: input, shape index: {}]
  %s16 = inlined_call_operand.vmem [shape: bf16[2,32,64], index: 16, kind: input, shape index: {}]
  %s17 = inlined_call_operand.vmem [shape: f32[2,1,64], index: 17, kind: input, shape index: {}]
  %s18 = inlined_call_operand.vmem [shape: bf16[2,64,32], index: 18, kind: input, shape index: {}]
  %s19 = inlined_call_operand.vmem [shape: f32[2,1,32], index: 19, kind: input, shape index: {}]
  %s20 = inlined_call_operand.vmem [shape: f32[2,1,32], index: 20, kind: input, shape index: {}]
  %s21 = inlined_call_operand.vmem [shape: f32[2,1,32], index: 21, kind: input, shape index: {}]
  %s22 = inlined_call_operand.vmem [shape: bf16[32,128], index: 22, kind: input, shape index: {}]
  %s23 = inlined_call_operand.hbm [shape: f32[1,128], index: 23, kind: input, shape index: {}]
  %s24 = inlined_call_operand.vmem [shape: bf16[32,128], index: 24, kind: input, shape index: {}]
  %s25 = inlined_call_operand.hbm [shape: f32[1,128], index: 25, kind: input, shape index: {}]
  %s26 = inlined_call_operand.vmem [shape: f32[16,128], index: 26, kind: output, shape index: {0}]
  %s27 = inlined_call_operand.hbm [shape: f32[2,128], index: 27, kind: output, shape index: {1}]
  %s28 = inlined_call_operand.hbm [shape: f32[1,1], index: 28, kind: output, shape index: {2}]
  %29 = xla_tuple %s26, %s27, %s28
  %s30 = sld [smem:[#allocation0]]
  $region138: #{joint_atis_forward.1} parent=0
    _
  %s32 = ssub.s32 1, %s30
  %s33 = scalar_select 0, %s32, %s30
  $region1: #{joint_atis_forward.1} parent=0
    #allocation2 [shape = 'u8[512]{0}', space=vmem, size = 0x400, scoped, tag = 'input window, operand 23, single buffered']
    #allocation3 [shape = 's32[1]{0}', space=sflag, size = 0x4, scoped, tag = 'scoped memory for joint_atis_forward.1']
    #allocation4 [shape = 's32[1]{0}', space=sflag, size = 0x4, scoped, tag = 'scoped memory for joint_atis_forward.1']
    #allocation5 [shape = 'u8[512]{0}', space=vmem, size = 0x400, scoped, tag = 'input window, operand 25, single buffered']
    #allocation6 [shape = 's32[1]{0}', space=sflag, size = 0x4, scoped, tag = 'scoped memory for joint_atis_forward.1']
    #allocation7 [shape = 'u8[1024]{0}', space=vmem, size = 0x400, scoped, tag = 'output window, operand 1, single buffered']
    #allocation8 [shape = 'u8[512]{0}', space=vmem, size = 0x400, scoped, tag = 'output window, operand 2, single buffered']
    #allocation9 [shape = 's32[1]{0}', space=sflag, size = 0x4, scoped, tag = 'scoped memory for joint_atis_forward.1']
    %34 = vsyncpa [#allocation3], 0
    %35 = vsyncpa [#allocation6], 0
    %36 = vsyncpa [#allocation4], 0
    %37 = vsyncpa [#allocation9], 0
    // Predicated region
    $region2: #{joint_atis_forward.1} parent=1 // pred_check
      _
    $region3: #{joint_atis_forward.1} parent=1 // pred_check_branch
      %39 = sbr.rel (0) target = $region5
    $region4: #{joint_atis_forward.1} parent=1 // pred_region
      _
    $region5: #{joint_atis_forward.1} parent=1 // pred_fallthru
      _
    // Predicated region
    $region6: #{joint_atis_forward.1} parent=1 // pred_check
      _
    $region7: #{joint_atis_forward.1} parent=1 // pred_check_branch
      %41 = sbr.rel (0) target = $region9
    $region8: #{joint_atis_forward.1} parent=1 // pred_region
      _
    $region9: #{joint_atis_forward.1} parent=1 // pred_fallthru
      _
    // Predicated region
    $region10: #{joint_atis_forward.1} parent=1 // pred_check
      _
    $region11: #{joint_atis_forward.1} parent=1 // pred_check_branch
      %43 = sbr.rel (0) target = $region13
    $region12: #{joint_atis_forward.1} parent=1 // pred_region
      _
    $region13: #{joint_atis_forward.1} parent=1 // pred_fallthru
      _
    // Predicated region
    $region14: #{joint_atis_forward.1} parent=1 // pred_check
      _
    $region15: #{joint_atis_forward.1} parent=1 // pred_check_branch
      %45 = sbr.rel (0) target = $region17
    $region16: #{joint_atis_forward.1} parent=1 // pred_region
      _
    $region17: #{joint_atis_forward.1} parent=1 // pred_fallthru
      _
    // Predicated region
    $region18: #{joint_atis_forward.1} parent=1 // pred_check
      _
    $region19: #{joint_atis_forward.1} parent=1 // pred_check_branch
      %47 = sbr.rel (0) target = $region21
    $region20: #{joint_atis_forward.1} parent=1 // pred_region
      _
    $region21: #{joint_atis_forward.1} parent=1 // pred_fallthru
      _
    // Predicated region
    $region22: #{joint_atis_forward.1} parent=1 // pred_check
      _
    $region23: #{joint_atis_forward.1} parent=1 // pred_check_branch
      %49 = sbr.rel (0) target = $region25
    $region24: #{joint_atis_forward.1} parent=1 // pred_region
      _
    $region25: #{joint_atis_forward.1} parent=1 // pred_fallthru
      _
    // Predicated region
    $region26: #{joint_atis_forward.1} parent=1 // pred_check
      _
    $region27: #{joint_atis_forward.1} parent=1 // pred_check_branch
      %51 = sbr.rel (0) target = $region29
    $region28: #{joint_atis_forward.1} parent=1 // pred_region
      _
    $region29: #{joint_atis_forward.1} parent=1 // pred_fallthru
      _
    // Predicated region
    $region30: #{joint_atis_forward.1} parent=1 // pred_check
      _
    $region31: #{joint_atis_forward.1} parent=1 // pred_check_branch
      %53 = sbr.rel (0) target = $region33
    $region32: #{joint_atis_forward.1} parent=1 // pred_region
      _
    $region33: #{joint_atis_forward.1} parent=1 // pred_fallthru
      _
    // Predicated region
    $region34: #{joint_atis_forward.1} parent=1 // pred_check
      _
    $region35: #{joint_atis_forward.1} parent=1 // pred_check_branch
      %55 = sbr.rel (0) target = $region37
    $region36: #{joint_atis_forward.1} parent=1 // pred_region
      _
    $region37: #{joint_atis_forward.1} parent=1 // pred_fallthru
      _
    // Predicated region
    $region38: #{joint_atis_forward.1} parent=1 // pred_check
      _
    $region39: #{joint_atis_forward.1} parent=1 // pred_check_branch
      %57 = sbr.rel (0) target = $region41
    $region40: #{joint_atis_forward.1} parent=1 // pred_region
      _
    $region41: #{joint_atis_forward.1} parent=1 // pred_fallthru
      _
    // Predicated region
    $region42: #{joint_atis_forward.1} parent=1 // pred_check
      _
    $region43: #{joint_atis_forward.1} parent=1 // pred_check_branch
      %59 = sbr.rel (0) target = $region45
    $region44: #{joint_atis_forward.1} parent=1 // pred_region
      _
    $region45: #{joint_atis_forward.1} parent=1 // pred_fallthru
      _
    // Predicated region
    $region46: #{joint_atis_forward.1} parent=1 // pred_check
      _
    $region47: #{joint_atis_forward.1} parent=1 // pred_check_branch
      %61 = sbr.rel (0) target = $region49
    $region48: #{joint_atis_forward.1} parent=1 // pred_region
      _
    $region49: #{joint_atis_forward.1} parent=1 // pred_fallthru
      _
    // Predicated region
    $region50: #{joint_atis_forward.1} parent=1 // pred_check
      _
    $region51: #{joint_atis_forward.1} parent=1 // pred_check_branch
      %63 = sbr.rel (0) target = $region53
    $region52: #{joint_atis_forward.1} parent=1 // pred_region
      _
    $region53: #{joint_atis_forward.1} parent=1 // pred_fallthru
      _
    // Predicated region
    $region54: #{joint_atis_forward.1} parent=1 // pred_check
      _
    $region55: #{joint_atis_forward.1} parent=1 // pred_check_branch
      %65 = sbr.rel (0) target = $region57
    $region56: #{joint_atis_forward.1} parent=1 // pred_region
      _
    $region57: #{joint_atis_forward.1} parent=1 // pred_fallthru
      _
    // Predicated region
    $region58: #{joint_atis_forward.1} parent=1 // pred_check
      _
    $region59: #{joint_atis_forward.1} parent=1 // pred_check_branch
      %67 = sbr.rel (0) target = $region61
    $region60: #{joint_atis_forward.1} parent=1 // pred_region
      _
    $region61: #{joint_atis_forward.1} parent=1 // pred_fallthru
      _
    // Predicated region
    $region62: #{joint_atis_forward.1} parent=1 // pred_check
      _
    $region63: #{joint_atis_forward.1} parent=1 // pred_check_branch
      %69 = sbr.rel (0) target = $region65
    $region64: #{joint_atis_forward.1} parent=1 // pred_region
      _
    $region65: #{joint_atis_forward.1} parent=1 // pred_fallthru
      _
    // Predicated region
    $region66: #{joint_atis_forward.1} parent=1 // pred_check
      _
    $region67: #{joint_atis_forward.1} parent=1 // pred_check_branch
      %71 = sbr.rel (0) target = $region69
    $region68: #{joint_atis_forward.1} parent=1 // pred_region
      _
    $region69: #{joint_atis_forward.1} parent=1 // pred_fallthru
      _
    // Predicated region
    $region70: #{joint_atis_forward.1} parent=1 // pred_check
      _
    $region71: #{joint_atis_forward.1} parent=1 // pred_check_branch
      %73 = sbr.rel (0) target = $region73
    $region72: #{joint_atis_forward.1} parent=1 // pred_region
      _
    $region73: #{joint_atis_forward.1} parent=1 // pred_fallthru
      _
    // Predicated region
    $region74: #{joint_atis_forward.1} parent=1 // pred_check
      _
    $region75: #{joint_atis_forward.1} parent=1 // pred_check_branch
      %75 = sbr.rel (0) target = $region77
    $region76: #{joint_atis_forward.1} parent=1 // pred_region
      _
    $region77: #{joint_atis_forward.1} parent=1 // pred_fallthru
      _
    // Predicated region
    $region78: #{joint_atis_forward.1} parent=1 // pred_check
      _
    $region79: #{joint_atis_forward.1} parent=1 // pred_check_branch
      %77 = sbr.rel (0) target = $region81
    $region80: #{joint_atis_forward.1} parent=1 // pred_region
      _
    $region81: #{joint_atis_forward.1} parent=1 // pred_fallthru
      _
    // Predicated region
    $region82: #{joint_atis_forward.1} parent=1 // pred_check
      _
    $region83: #{joint_atis_forward.1} parent=1 // pred_check_branch
      %79 = sbr.rel (0) target = $region85
    $region84: #{joint_atis_forward.1} parent=1 // pred_region
      _
    $region85: #{joint_atis_forward.1} parent=1 // pred_fallthru
      _
    // Predicated region
    $region86: #{joint_atis_forward.1} parent=1 // pred_check
      _
    $region87: #{joint_atis_forward.1} parent=1 // pred_check_branch
      %81 = sbr.rel (0) target = $region89
    $region88: #{joint_atis_forward.1} parent=1 // pred_region
      _
    $region89: #{joint_atis_forward.1} parent=1 // pred_fallthru
      _
    // Predicated region
    $region90: #{joint_atis_forward.1} parent=1 // pred_check
      _
    $region91: #{joint_atis_forward.1} parent=1 // pred_check_branch
      %83 = sbr.rel (0) target = $region93
    $region92: #{joint_atis_forward.1} parent=1 // pred_region
      _
    $region93: #{joint_atis_forward.1} parent=1 // pred_fallthru
      _
    // Predicated region
    $region94: #{joint_atis_forward.1} parent=1 // pred_check
      _
    $region95: #{joint_atis_forward.1} parent=1 // pred_check_branch
      %85 = sbr.rel (0) target = $region97
    $region96: #{joint_atis_forward.1} parent=1 // pred_region
      %s87 = ssub.s32 16, 16
      %88 = vsyncadd [#allocation3], %s87
      %s90 = sshll.u32 [#allocation2], 4
      %s91 = int_to_ptr.vmem [resolvable:$true] %s90
      %93 = dma.hbm_to_vmem [thread:$0]  %s23, 16, %s91, [#allocation3]
    $region97: #{joint_atis_forward.1} parent=1 // pred_fallthru
      _
    // Predicated region
    $region98: #{joint_atis_forward.1} parent=1 // pred_check
      _
    $region99: #{joint_atis_forward.1} parent=1 // pred_check_branch
      %95 = sbr.rel (0) target = $region101
    $region100: #{joint_atis_forward.1} parent=1 // pred_region
      _
    $region101: #{joint_atis_forward.1} parent=1 // pred_fallthru
      _
    // Predicated region
    $region102: #{joint_atis_forward.1} parent=1 // pred_check
      _
    $region103: #{joint_atis_forward.1} parent=1 // pred_check_branch
      %97 = sbr.rel (0) target = $region105
    $region104: #{joint_atis_forward.1} parent=1 // pred_region
      %s99 = ssub.s32 16, 16
      %100 = vsyncadd [#allocation6], %s99
      %s102 = sshll.u32 [#allocation5], 4
      %s103 = int_to_ptr.vmem [resolvable:$true] %s102
      %105 = dma.hbm_to_vmem [thread:$0]  %s25, 16, %s103, [#allocation6]
    $region105: #{joint_atis_forward.1} parent=1 // pred_fallthru
      _
    // Predicated region
    $region106: #{joint_atis_forward.1} parent=1 // pred_check
      _
    $region107: #{joint_atis_forward.1} parent=1 // pred_check_branch
      %107 = sbr.rel (0) target = $region109
    $region108: #{joint_atis_forward.1} parent=1 // pred_region
      %108 = dma.done [#allocation3], 16
    $region109: #{joint_atis_forward.1} parent=1 // pred_fallthru
      _
    // Predicated region
    $region110: #{joint_atis_forward.1} parent=1 // pred_check
      _
    $region111: #{joint_atis_forward.1} parent=1 // pred_check_branch
      %110 = sbr.rel (0) target = $region113
    $region112: #{joint_atis_forward.1} parent=1 // pred_region
      %111 = dma.done [#allocation6], 16
    $region113: #{joint_atis_forward.1} parent=1 // pred_fallthru
      _
    %v113 = vld [vmem:[%s0] sm:$0xff]
    %v114 = vld [vmem:[%s0 + $0x8] sm:$0xff]
    %v115 = vlaneseq
    %v116 = vand.u32 %v115, 127
    %117 = vset.pattern.permute.xlu0 0
    %118 = vperm.xlu0 %117, %v113
    %v119 = vpop.permute.xlu0 %118
    %120 = vset.pattern.permute.xlu0 0
    %121 = vperm.xlu0 %120, %v114
    %v122 = vpop.permute.xlu0 %121
    %vm123 = vcmp.eq.s32.totalorder %v116, %v119
    %vm124 = vcmp.eq.s32.totalorder %v116, %v122
    %v125 = vsel %vm123, 1, 0
    %v126 = vsel %vm124, 1, 0
    %v127 = vcvt.s32.f32 %v125
    %v128 = vcvt.s32.f32 %v126
    %v129 = vpack.c.bf16 %v128, %v127
    %v130 = vld [vmem:[%s6] sm:$0xf]
    %v131 = vld [vmem:[%s6 + $0x4] sm:$0xf]
    %v132 = vld [vmem:[%s6 + $0x8] sm:$0xf]
    %v133 = vld [vmem:[%s6 + $0xc] sm:$0xf]
    %v134 = vld [vmem:[%s6 + $0x10] sm:$0xf]
    %v135 = vld [vmem:[%s6 + $0x14] sm:$0xf]
    %v136 = vld [vmem:[%s6 + $0x18] sm:$0xf]
    %v137 = vld [vmem:[%s6 + $0x1c] sm:$0xf]
    %v138 = vld [vmem:[%s6 + $0x20] sm:$0xf]
    %v139 = vld [vmem:[%s6 + $0x24] sm:$0xf]
    %v140 = vld [vmem:[%s6 + $0x28] sm:$0xf]
    %v141 = vld [vmem:[%s6 + $0x2c] sm:$0xf]
    %v142 = vld [vmem:[%s6 + $0x30] sm:$0xf]
    %v143 = vld [vmem:[%s6 + $0x34] sm:$0xf]
    %v144 = vld [vmem:[%s6 + $0x38] sm:$0xf]
    %v145 = vld [vmem:[%s6 + $0x3c] sm:$0xf]
    %v146 = vld [vmem:[%s3] sm:$0xff]
    %v147 = vld [vmem:[%s3 + $0x8] sm:$0xff]
    %148 = vset.pattern.permute.xlu0 0
    %149 = vperm.xlu0 %148, %v146
    %v150 = vpop.permute.xlu0 %149
    %151 = vset.pattern.permute.xlu0 0
    %152 = vperm.xlu0 %151, %v147
    %v153 = vpop.permute.xlu0 %152
    %vm154 = vcmp.eq.s32.totalorder %v116, %v150
    %vm155 = vcmp.eq.s32.totalorder %v116, %v153
    %v156 = vsel %vm154, 1, 0
    %v157 = vsel %vm155, 1, 0
    %v158 = vcvt.s32.f32 %v156
    %v159 = vcvt.s32.f32 %v157
    %v160 = vpack.c.bf16 %v159, %v158
    %v161 = vld [vmem:[%s7] sm:$0xf]
    %v162 = vld [vmem:[%s7 + $0x4] sm:$0xf]
    %v165 = vunpack.c.l.b16 %v161
    %v166 = vunpack.c.l.b16 %v162
    %v167 = vpack.c.b16 %v166, %v165
    %vm169 = vcmask 130048
    %v171 = vsel %vm169, %v160, 0
    %173 = vmatprep.subr.bf16.mxu0 0
    %174 = vmatpush1.bf16.msra.mxu0 0
    %175 = vmatprep.subr.bf16.mxu0 0
    %176 = vmatpush1.bf16.msra.mxu0 0
    %177 = vmatprep.subr.bf16.mxu0 0
    %178 = vmatpush1.bf16.msra.mxu0 0
    %179 = vmatprep.subr.bf16.mxu0 0
    %180 = vmatpush1.bf16.msra.mxu0 0
    %181 = vmatprep.subr.bf16.mxu0 0
    %182 = vmatpush1.bf16.msra.mxu0 0
    %183 = vmatprep.subr.bf16.mxu0 0
    %184 = vmatpush1.bf16.msra.mxu0 0
    %185 = vmatprep.subr.bf16.mxu0 0
    %186 = vmatpush1.bf16.msra.mxu0 0
    %187 = vmatprep.subr.bf16.mxu0 0
    %188 = vmatpush1.bf16.msra.mxu0 %v167
    %189 = vmatprep.subr.bf16.mxu0 0
    %190 = vmatpush2.bf16.msra.mxu0 0
    %191 = vmatprep.subr.bf16.mxu0 0
    %192 = vmatpush2.bf16.msra.mxu0 0
    %193 = vmatprep.subr.bf16.mxu0 0
    %194 = vmatpush2.bf16.msra.mxu0 0
    %195 = vmatprep.subr.bf16.mxu0 0
    %196 = vmatpush2.bf16.msra.mxu0 0
    %197 = vmatprep.subr.bf16.mxu0 0
    %198 = vmatpush2.bf16.msra.mxu0 0
    %199 = vmatprep.subr.bf16.mxu0 0
    %200 = vmatpush2.bf16.msra.mxu0 0
    %201 = vmatprep.subr.bf16.mxu0 0
    %202 = vmatpush2.bf16.msra.mxu0 0
    %203 = vmatprep.subr.bf16.mxu0 0
    %204 = vmatpush2.bf16.msra.mxu0 0
    %205 = vmatprep.mubr.bf16.mxu0 0
    %206 = vmatmul.mubr.bf16.gmra.mxu0 %v171
    %v207 = vpop.f32.mrf.mxu0
    %v208 = vadd.f32 0.0, %v207
    %v209 = vpop.f32.mrf.mxu0
    %v210 = vpop.f32.mrf.mxu0
    %v211 = vadd.f32 0.0, %v210
    %v212 = vpop.f32.mrf.mxu0
    %213 = vdwg.mxu0
    %v230 = vunpack.c.l.b16 %v130
    %v231 = vunpack.c.l.b16 %v131
    %v232 = vunpack.c.l.b16 %v132
    %v233 = vunpack.c.l.b16 %v133
    %v234 = vunpack.c.l.b16 %v134
    %v235 = vunpack.c.l.b16 %v135
    %v236 = vunpack.c.l.b16 %v136
    %v237 = vunpack.c.l.b16 %v137
    %v238 = vunpack.c.l.b16 %v138
    %v239 = vunpack.c.l.b16 %v139
    %v240 = vunpack.c.l.b16 %v140
    %v241 = vunpack.c.l.b16 %v141
    %v242 = vunpack.c.l.b16 %v142
    %v243 = vunpack.c.l.b16 %v143
    %v244 = vunpack.c.l.b16 %v144
    %v245 = vunpack.c.l.b16 %v145
    %v246 = vpack.c.b16 %v231, %v230
    %v247 = vpack.c.b16 %v233, %v232
    %v248 = vpack.c.b16 %v235, %v234
    %v249 = vpack.c.b16 %v237, %v236
    %v250 = vpack.c.b16 %v239, %v238
    %v251 = vpack.c.b16 %v241, %v240
    %v252 = vpack.c.b16 %v243, %v242
    %v253 = vpack.c.b16 %v245, %v244
    %262 = vmatprep.subr.bf16.mxu0 0
    %263 = vmatpush1.bf16.msra.mxu0 %v253
    %264 = vmatprep.subr.bf16.mxu0 0
    %265 = vmatpush1.bf16.msra.mxu0 %v252
    %266 = vmatprep.subr.bf16.mxu0 0
    %267 = vmatpush1.bf16.msra.mxu0 %v251
    %268 = vmatprep.subr.bf16.mxu0 0
    %269 = vmatpush1.bf16.msra.mxu0 %v250
    %270 = vmatprep.subr.bf16.mxu0 0
    %271 = vmatpush1.bf16.msra.mxu0 %v249
    %272 = vmatprep.subr.bf16.mxu0 0
    %273 = vmatpush1.bf16.msra.mxu0 %v248
    %274 = vmatprep.subr.bf16.mxu0 0
    %275 = vmatpush1.bf16.msra.mxu0 %v247
    %276 = vmatprep.subr.bf16.mxu0 0
    %277 = vmatpush1.bf16.msra.mxu0 %v246
    %278 = vmatprep.subr.bf16.mxu0 0
    %279 = vmatpush2.bf16.msra.mxu0 0
    %280 = vmatprep.subr.bf16.mxu0 0
    %281 = vmatpush2.bf16.msra.mxu0 0
    %282 = vmatprep.subr.bf16.mxu0 0
    %283 = vmatpush2.bf16.msra.mxu0 0
    %284 = vmatprep.subr.bf16.mxu0 0
    %285 = vmatpush2.bf16.msra.mxu0 0
    %286 = vmatprep.subr.bf16.mxu0 0
    %287 = vmatpush2.bf16.msra.mxu0 0
    %288 = vmatprep.subr.bf16.mxu0 0
    %289 = vmatpush2.bf16.msra.mxu0 0
    %290 = vmatprep.subr.bf16.mxu0 0
    %291 = vmatpush2.bf16.msra.mxu0 0
    %292 = vmatprep.subr.bf16.mxu0 0
    %293 = vmatpush2.bf16.msra.mxu0 0
    %294 = vmatprep.mubr.bf16.mxu0 0
    %295 = vmatmul.mubr.bf16.gmra.mxu0 %v129
    %v296 = vpop.f32.mrf.mxu0
    %v297 = vadd.f32 %v208, %v296
    %v298 = vpop.f32.mrf.mxu0
    %v299 = vpop.f32.mrf.mxu0
    %v300 = vadd.f32 %v211, %v299
    %v301 = vpop.f32.mrf.mxu0
    %302 = vdwg.mxu0
    %v303 = vld [vmem:[%s8] sm:$0x1]
    %v304 = vld [vmem:[%s9] sm:$0x1]
    %vm305 = vcmask 261120
    %v306 = vsel %vm305, %v297, 0.0
    %307 = vadd.xlane.f32.xlu0 %v306
    %v308 = vpop.xlane.xlu0 %307
    %v309 = vsel %vm305, %v300, 0.0
    %310 = vadd.xlane.f32.xlu0 %v309
    %v311 = vpop.xlane.xlu0 %310
    %v312 = vrcp.pop 32.0
    %v313 = vmul.f32 %v308, %v312
    %v314 = vmul.f32 %v311, %v312
    %v315 = vsub.f32 %v297, %v313
    %v316 = vsub.f32 %v300, %v314
    %v317 = vmul.f32 %v315, %v315
    %v318 = vmul.f32 %v316, %v316
    %v319 = vsel %vm305, %v317, 0.0
    %320 = vadd.xlane.f32.xlu0 %v319
    %v321 = vpop.xlane.xlu0 %320
    %v322 = vsel %vm305, %v318, 0.0
    %323 = vadd.xlane.f32.xlu0 %v322
    %v324 = vpop.xlane.xlu0 %323
    %v325 = vmul.f32 %v321, %v312
    %v326 = vmul.f32 %v324, %v312
    %v327 = vadd.f32 %v325, 1e-12
    %v328 = vadd.f32 %v326, 1e-12
    %v329 = vrsqrt.pop %v327
    %v330 = vrsqrt.pop %v328
    %v331 = vmul.f32 %v315, %v329
    %v332 = vmul.f32 %v316, %v330
    %v334 = vlaneseq
    %v335 = vshrl.u32 %v334, 7
    %v336 = vsub.s32 0, %v335
    %v337 = vrot.slane %v303, %v336
    %v339 = vmul.f32 %v331, %v337
    %v340 = vmul.f32 %v332, %v337
    %v342 = vlaneseq
    %v343 = vshrl.u32 %v342, 7
    %v344 = vsub.s32 0, %v343
    %v345 = vrot.slane %v304, %v344
    %v347 = vadd.f32 %v339, %v345
    %v348 = vadd.f32 %v340, %v345
    %v349 = vld [vmem:[%s4] sm:$0xff]
    %v350 = vld [vmem:[%s4 + $0x8] sm:$0xff]
    %v351 = vld [vmem:[%s5] sm:$0x1]
    %352 = vset.pattern.permute.xlu0 0
    %353 = vperm.xlu0 %352, %v349
    %v354 = vpop.permute.xlu0 %353
    %355 = vset.pattern.permute.xlu0 0
    %356 = vperm.xlu0 %355, %v350
    %v357 = vpop.permute.xlu0 %356
    %v358 = vlaneseq
    %v359 = vshrl.u32 %v358, 7
    %v360 = vsub.s32 0, %v359
    %v361 = vrot.slane %v351, %v360
    %vm362 = vcmp.eq.s32.totalorder %v354, %v361
    %vm363 = vcmp.eq.s32.totalorder %v357, %v361
    %v364 = vld [vmem:[%s1] sm:$0x1]
    %vm365 = vcmp.gt.f32.partialorder %v364, 0.5
    %v366 = vsel %vm365, 1, 0
    %v367 = vlaneseq
    %v368 = vshrl.u32 %v367, 7
    %v369 = vsub.s32 0, %v368
    %v370 = vrot.slane %v366, %v369
    %vm371 = vcmp.eq.s32.totalorder %v370, 1
    %vm372 = vmand %vm362, %vm371
    %vm373 = vmand %vm363, %vm371
    %v374 = vsel %vm372, 0.0, -1e+09
    %v375 = vsel %vm373, 0.0, -1e+09
    %v376 = vpack.c.bf16 %v348, %v347
    %v377 = vld [vmem:[%s10] sm:$0xf]
    %v378 = vld [vmem:[%s10 + $0x4] sm:$0xf]
    %v379 = vld [vmem:[%s10 + $0x8] sm:$0xf]
    %v380 = vld [vmem:[%s10 + $0xc] sm:$0xf]
    %v381 = vld [vmem:[%s11] sm:$0x1]
    %v383 = vlaneseq
    %v384 = vshrl.u32 %v383, 7
    %v385 = vsub.s32 0, %v384
    %v386 = vrot.slane %v381, %v385
    %v392 = vunpack.c.l.b16 %v377
    %v393 = vunpack.c.l.b16 %v378
    %v394 = vunpack.c.l.b16 %v379
    %v395 = vunpack.c.l.b16 %v380
    %v396 = vpack.c.b16 %v393, %v392
    %v397 = vpack.c.b16 %v395, %v394
    %v401 = vsel %vm305, %v376, 0
    %403 = vmatprep.subr.bf16.mxu0 0
    %404 = vmatpush1.bf16.msra.mxu0 0
    %405 = vmatprep.subr.bf16.mxu0 0
    %406 = vmatpush1.bf16.msra.mxu0 0
    %407 = vmatprep.subr.bf16.mxu0 0
    %408 = vmatpush1.bf16.msra.mxu0 0
    %409 = vmatprep.subr.bf16.mxu0 0
    %410 = vmatpush1.bf16.msra.mxu0 0
    %411 = vmatprep.subr.bf16.mxu0 0
    %412 = vmatpush1.bf16.msra.mxu0 0
    %413 = vmatprep.subr.bf16.mxu0 0
    %414 = vmatpush1.bf16.msra.mxu0 0
    %415 = vmatprep.subr.bf16.mxu0 0
    %416 = vmatpush1.bf16.msra.mxu0 %v397
    %417 = vmatprep.subr.bf16.mxu0 0
    %418 = vmatpush1.bf16.msra.mxu0 %v396
    %419 = vmatprep.subr.bf16.mxu0 0
    %420 = vmatpush2.bf16.msra.mxu0 0
    %421 = vmatprep.subr.bf16.mxu0 0
    %422 = vmatpush2.bf16.msra.mxu0 0
    %423 = vmatprep.subr.bf16.mxu0 0
    %424 = vmatpush2.bf16.msra.mxu0 0
    %425 = vmatprep.subr.bf16.mxu0 0
    %426 = vmatpush2.bf16.msra.mxu0 0
    %427 = vmatprep.subr.bf16.mxu0 0
    %428 = vmatpush2.bf16.msra.mxu0 0
    %429 = vmatprep.subr.bf16.mxu0 0
    %430 = vmatpush2.bf16.msra.mxu0 0
    %431 = vmatprep.subr.bf16.mxu0 0
    %432 = vmatpush2.bf16.msra.mxu0 0
    %433 = vmatprep.subr.bf16.mxu0 0
    %434 = vmatpush2.bf16.msra.mxu0 0
    %435 = vmatprep.mubr.bf16.mxu0 0
    %436 = vmatmul.mubr.bf16.gmra.mxu0 %v401
    %v437 = vpop.f32.mrf.mxu0
    %v438 = vadd.f32 %v386, %v437
    %v439 = vpop.f32.mrf.mxu0
    %v440 = vpop.f32.mrf.mxu0
    %v441 = vadd.f32 %v386, %v440
    %v442 = vpop.f32.mrf.mxu0
    %443 = vdwg.mxu0
    %v444 = vpack.c.bf16 %v441, %v438
    %446 = vrot.lane.b32.xlu0 %v444, 96
    %v447 = vpop.permute.xlu0 %446
    %v449 = vsel %vm169, %v444, 0
    %v452 = vsel %vm169, %v447, 0
    %454 = vmatprep.subr.bf16.mxu0 0
    %455 = vmatpush1.bf16.xpose.msra.mxu0 0
    %456 = vmatprep.subr.bf16.mxu0 0
    %457 = vmatpush1.bf16.xpose.msra.mxu0 0
    %458 = vmatprep.subr.bf16.mxu0 0
    %459 = vmatpush1.bf16.xpose.msra.mxu0 0
    %460 = vmatprep.subr.bf16.mxu0 0
    %461 = vmatpush1.bf16.xpose.msra.mxu0 0
    %462 = vmatprep.subr.bf16.mxu0 0
    %463 = vmatpush1.bf16.xpose.msra.mxu0 0
    %464 = vmatprep.subr.bf16.mxu0 0
    %465 = vmatpush1.bf16.xpose.msra.mxu0 0
    %466 = vmatprep.subr.bf16.mxu0 0
    %467 = vmatpush1.bf16.xpose.msra.mxu0 0
    %468 = vmatprep.subr.bf16.mxu0 0
    %469 = vmatpush1.bf16.xpose.msra.mxu0 %v452
    %470 = vmatprep.subr.bf16.mxu0 0
    %471 = vmatpush2.bf16.xpose.msra.mxu0 0
    %472 = vmatprep.subr.bf16.mxu0 0
    %473 = vmatpush2.bf16.xpose.msra.mxu0 0
    %474 = vmatprep.subr.bf16.mxu0 0
    %475 = vmatpush2.bf16.xpose.msra.mxu0 0
    %476 = vmatprep.subr.bf16.mxu0 0
    %477 = vmatpush2.bf16.xpose.msra.mxu0 0
    %478 = vmatprep.subr.bf16.mxu0 0
    %479 = vmatpush2.bf16.xpose.msra.mxu0 0
    %480 = vmatprep.subr.bf16.mxu0 0
    %481 = vmatpush2.bf16.xpose.msra.mxu0 0
    %482 = vmatprep.subr.bf16.mxu0 0
    %483 = vmatpush2.bf16.xpose.msra.mxu0 0
    %484 = vmatprep.subr.bf16.mxu0 0
    %485 = vmatpush2.bf16.xpose.msra.mxu0 0
    %486 = vmatprep.mubr.bf16.mxu0 0
    %487 = vmatmul.mubr.bf16.gmra.mxu0 %v449
    %v488 = vpop.f32.mrf.mxu0
    %v489 = vadd.f32 0.0, %v488
    %v490 = vpop.f32.mrf.mxu0
    %v491 = vpop.f32.mrf.mxu0
    %v492 = vadd.f32 0.0, %v491
    %v493 = vpop.f32.mrf.mxu0
    %494 = vdwg.mxu0
    %v495 = vmul.f32 %v489, 0.25
    %v496 = vmul.f32 %v492, 0.25
    %v497 = vadd.f32 %v495, %v374
    %v498 = vadd.f32 %v496, %v375
    %v499 = vsel %vm169, %v497, -inf
    %500 = vmax.xlane.f32.xlu0 %v499
    %v501 = vpop.xlane.xlu0 %500
    %v502 = vsel %vm169, %v498, -inf
    %503 = vmax.xlane.f32.xlu0 %v502
    %v504 = vpop.xlane.xlu0 %503
    %v505 = vsub.f32 %v497, %v501
    %v506 = vsub.f32 %v498, %v504
    %v507 = vmul.f32 %v505, 1.442695
    %v508 = vpow.pop %v507
    %v509 = vmul.f32 %v506, 1.442695
    %v510 = vpow.pop %v509
    %v511 = vsel %vm169, %v508, 0.0
    %512 = vadd.xlane.f32.xlu0 %v511
    %v513 = vpop.xlane.xlu0 %512
    %v514 = vsel %vm169, %v510, 0.0
    %515 = vadd.xlane.f32.xlu0 %v514
    %v516 = vpop.xlane.xlu0 %515
    %v517 = vrcp.pop %v513
    %v518 = vrcp.pop %v516
    %v519 = vmul.f32 %v508, %v517
    %v520 = vmul.f32 %v510, %v518
    %v521 = vpack.c.bf16 %v520, %v519
    %522 = vrot.lane.b32.xlu0 %v444, 64
    %v523 = vpop.permute.xlu0 %522
    %v526 = vsel %vm169, %v521, 0
    %528 = vmatprep.subr.bf16.mxu0 0
    %529 = vmatpush1.bf16.msra.mxu0 0
    %530 = vmatprep.subr.bf16.mxu0 0
    %531 = vmatpush1.bf16.msra.mxu0 0
    %532 = vmatprep.subr.bf16.mxu0 0
    %533 = vmatpush1.bf16.msra.mxu0 0
    %534 = vmatprep.subr.bf16.mxu0 0
    %535 = vmatpush1.bf16.msra.mxu0 0
    %536 = vmatprep.subr.bf16.mxu0 0
    %537 = vmatpush1.bf16.msra.mxu0 0
    %538 = vmatprep.subr.bf16.mxu0 0
    %539 = vmatpush1.bf16.msra.mxu0 0
    %540 = vmatprep.subr.bf16.mxu0 0
    %541 = vmatpush1.bf16.msra.mxu0 0
    %542 = vmatprep.subr.bf16.mxu0 0
    %543 = vmatpush1.bf16.msra.mxu0 %v523
    %544 = vmatprep.subr.bf16.mxu0 0
    %545 = vmatpush2.bf16.msra.mxu0 0
    %546 = vmatprep.subr.bf16.mxu0 0
    %547 = vmatpush2.bf16.msra.mxu0 0
    %548 = vmatprep.subr.bf16.mxu0 0
    %549 = vmatpush2.bf16.msra.mxu0 0
    %550 = vmatprep.subr.bf16.mxu0 0
    %551 = vmatpush2.bf16.msra.mxu0 0
    %552 = vmatprep.subr.bf16.mxu0 0
    %553 = vmatpush2.bf16.msra.mxu0 0
    %554 = vmatprep.subr.bf16.mxu0 0
    %555 = vmatpush2.bf16.msra.mxu0 0
    %556 = vmatprep.subr.bf16.mxu0 0
    %557 = vmatpush2.bf16.msra.mxu0 0
    %558 = vmatprep.subr.bf16.mxu0 0
    %559 = vmatpush2.bf16.msra.mxu0 0
    %560 = vmatprep.mubr.bf16.mxu0 0
    %561 = vmatmul.mubr.bf16.gmra.mxu0 %v526
    %v562 = vpop.f32.mrf.mxu0
    %v563 = vadd.f32 0.0, %v562
    %v564 = vpop.f32.mrf.mxu0
    %v565 = vpop.f32.mrf.mxu0
    %v566 = vadd.f32 0.0, %v565
    %v567 = vpop.f32.mrf.mxu0
    %568 = vdwg.mxu0
    %v569 = vpack.c.bf16 %v566, %v563
    %v570 = vld [vmem:[%s12] sm:$0xf]
    %v571 = vld [vmem:[%s12 + $0x4] sm:$0xf]
    %572 = vrot.lane.b32.xlu0 %v444, 112
    %v573 = vpop.permute.xlu0 %572
    %574 = vrot.lane.b32.xlu0 %v444, 80
    %v575 = vpop.permute.xlu0 %574
    %v577 = vsel %vm169, %v573, 0
    %v580 = vsel %vm169, %v575, 0
    %582 = vmatprep.subr.bf16.mxu0 0
    %583 = vmatpush1.bf16.xpose.msra.mxu0 0
    %584 = vmatprep.subr.bf16.mxu0 0
    %585 = vmatpush1.bf16.xpose.msra.mxu0 0
    %586 = vmatprep.subr.bf16.mxu0 0
    %587 = vmatpush1.bf16.xpose.msra.mxu0 0
    %588 = vmatprep.subr.bf16.mxu0 0
    %589 = vmatpush1.bf16.xpose.msra.mxu0 0
    %590 = vmatprep.subr.bf16.mxu0 0
    %591 = vmatpush1.bf16.xpose.msra.mxu0 0
    %592 = vmatprep.subr.bf16.mxu0 0
    %593 = vmatpush1.bf16.xpose.msra.mxu0 0
    %594 = vmatprep.subr.bf16.mxu0 0
    %595 = vmatpush1.bf16.xpose.msra.mxu0 0
    %596 = vmatprep.subr.bf16.mxu0 0
    %597 = vmatpush1.bf16.xpose.msra.mxu0 %v580
    %598 = vmatprep.subr.bf16.mxu0 0
    %599 = vmatpush2.bf16.xpose.msra.mxu0 0
    %600 = vmatprep.subr.bf16.mxu0 0
    %601 = vmatpush2.bf16.xpose.msra.mxu0 0
    %602 = vmatprep.subr.bf16.mxu0 0
    %603 = vmatpush2.bf16.xpose.msra.mxu0 0
    %604 = vmatprep.subr.bf16.mxu0 0
    %605 = vmatpush2.bf16.xpose.msra.mxu0 0
    %606 = vmatprep.subr.bf16.mxu0 0
    %607 = vmatpush2.bf16.xpose.msra.mxu0 0
    %608 = vmatprep.subr.bf16.mxu0 0
    %609 = vmatpush2.bf16.xpose.msra.mxu0 0
    %610 = vmatprep.subr.bf16.mxu0 0
    %611 = vmatpush2.bf16.xpose.msra.mxu0 0
    %612 = vmatprep.subr.bf16.mxu0 0
    %613 = vmatpush2.bf16.xpose.msra.mxu0 0
    %614 = vmatprep.mubr.bf16.mxu0 0
    %615 = vmatmul.mubr.bf16.gmra.mxu0 %v577
    %v616 = vpop.f32.mrf.mxu0
    %v617 = vadd.f32 0.0, %v616
    %v618 = vpop.f32.mrf.mxu0
    %v619 = vpop.f32.mrf.mxu0
    %v620 = vadd.f32 0.0, %v619
    %v621 = vpop.f32.mrf.mxu0
    %622 = vdwg.mxu0
    %v623 = vmul.f32 %v617, 0.25
    %v624 = vmul.f32 %v620, 0.25
    %v625 = vadd.f32 %v623, %v374
    %v626 = vadd.f32 %v624, %v375
    %v627 = vsel %vm169, %v625, -inf
    %628 = vmax.xlane.f32.xlu0 %v627
    %v629 = vpop.xlane.xlu0 %628
    %v630 = vsel %vm169, %v626, -inf
    %631 = vmax.xlane.f32.xlu0 %v630
    %v632 = vpop.xlane.xlu0 %631
    %v633 = vsub.f32 %v625, %v629
    %v634 = vsub.f32 %v626, %v632
    %v635 = vmul.f32 %v633, 1.442695
    %v636 = vpow.pop %v635
    %v637 = vmul.f32 %v634, 1.442695
    %v638 = vpow.pop %v637
    %v639 = vsel %vm169, %v636, 0.0
    %640 = vadd.xlane.f32.xlu0 %v639
    %v641 = vpop.xlane.xlu0 %640
    %v642 = vsel %vm169, %v638, 0.0
    %643 = vadd.xlane.f32.xlu0 %v642
    %v644 = vpop.xlane.xlu0 %643
    %v645 = vrcp.pop %v641
    %v646 = vrcp.pop %v644
    %v647 = vmul.f32 %v636, %v645
    %v648 = vmul.f32 %v638, %v646
    %v649 = vpack.c.bf16 %v648, %v647
    %650 = vrot.lane.b32.xlu0 %v444, 48
    %v651 = vpop.permute.xlu0 %650
    %v654 = vsel %vm169, %v649, 0
    %656 = vmatprep.subr.bf16.mxu0 0
    %657 = vmatpush1.bf16.msra.mxu0 0
    %658 = vmatprep.subr.bf16.mxu0 0
    %659 = vmatpush1.bf16.msra.mxu0 0
    %660 = vmatprep.subr.bf16.mxu0 0
    %661 = vmatpush1.bf16.msra.mxu0 0
    %662 = vmatprep.subr.bf16.mxu0 0
    %663 = vmatpush1.bf16.msra.mxu0 0
    %664 = vmatprep.subr.bf16.mxu0 0
    %665 = vmatpush1.bf16.msra.mxu0 0
    %666 = vmatprep.subr.bf16.mxu0 0
    %667 = vmatpush1.bf16.msra.mxu0 0
    %668 = vmatprep.subr.bf16.mxu0 0
    %669 = vmatpush1.bf16.msra.mxu0 0
    %670 = vmatprep.subr.bf16.mxu0 0
    %671 = vmatpush1.bf16.msra.mxu0 %v651
    %672 = vmatprep.subr.bf16.mxu0 0
    %673 = vmatpush2.bf16.msra.mxu0 0
    %674 = vmatprep.subr.bf16.mxu0 0
    %675 = vmatpush2.bf16.msra.mxu0 0
    %676 = vmatprep.subr.bf16.mxu0 0
    %677 = vmatpush2.bf16.msra.mxu0 0
    %678 = vmatprep.subr.bf16.mxu0 0
    %679 = vmatpush2.bf16.msra.mxu0 0
    %680 = vmatprep.subr.bf16.mxu0 0
    %681 = vmatpush2.bf16.msra.mxu0 0
    %682 = vmatprep.subr.bf16.mxu0 0
    %683 = vmatpush2.bf16.msra.mxu0 0
    %684 = vmatprep.subr.bf16.mxu0 0
    %685 = vmatpush2.bf16.msra.mxu0 0
    %686 = vmatprep.subr.bf16.mxu0 0
    %687 = vmatpush2.bf16.msra.mxu0 0
    %688 = vmatprep.mubr.bf16.mxu0 0
    %689 = vmatmul.mubr.bf16.gmra.mxu0 %v654
    %v690 = vpop.f32.mrf.mxu0
    %v691 = vadd.f32 0.0, %v690
    %v692 = vpop.f32.mrf.mxu0
    %v693 = vpop.f32.mrf.mxu0
    %v694 = vadd.f32 0.0, %v693
    %v695 = vpop.f32.mrf.mxu0
    %696 = vdwg.mxu0
    %v697 = vpack.c.bf16 %v694, %v691
    %s698 = scalar_lea.vmem %s12, 8
    %v699 = vld [vmem:[%s698] sm:$0xf]
    %v700 = vld [vmem:[%s698 + $0x4] sm:$0xf]
    %v703 = vunpack.c.l.b16 %v699
    %v704 = vunpack.c.l.b16 %v700
    %v705 = vpack.c.b16 %v704, %v703
    %v708 = vsel %vm169, %v697, 0
    %710 = vmatprep.subr.bf16.mxu0 0
    %711 = vmatpush1.bf16.msra.mxu0 0
    %712 = vmatprep.subr.bf16.mxu0 0
    %713 = vmatpush1.bf16.msra.mxu0 0
    %714 = vmatprep.subr.bf16.mxu0 0
    %715 = vmatpush1.bf16.msra.mxu0 0
    %716 = vmatprep.subr.bf16.mxu0 0
    %717 = vmatpush1.bf16.msra.mxu0 0
    %718 = vmatprep.subr.bf16.mxu0 0
    %719 = vmatpush1.bf16.msra.mxu0 0
    %720 = vmatprep.subr.bf16.mxu0 0
    %721 = vmatpush1.bf16.msra.mxu0 0
    %722 = vmatprep.subr.bf16.mxu0 0
    %723 = vmatpush1.bf16.msra.mxu0 0
    %724 = vmatprep.subr.bf16.mxu0 0
    %725 = vmatpush1.bf16.msra.mxu0 %v705
    %726 = vmatprep.subr.bf16.mxu0 0
    %727 = vmatpush2.bf16.msra.mxu0 0
    %728 = vmatprep.subr.bf16.mxu0 0
    %729 = vmatpush2.bf16.msra.mxu0 0
    %730 = vmatprep.subr.bf16.mxu0 0
    %731 = vmatpush2.bf16.msra.mxu0 0
    %732 = vmatprep.subr.bf16.mxu0 0
    %733 = vmatpush2.bf16.msra.mxu0 0
    %734 = vmatprep.subr.bf16.mxu0 0
    %735 = vmatpush2.bf16.msra.mxu0 0
    %736 = vmatprep.subr.bf16.mxu0 0
    %737 = vmatpush2.bf16.msra.mxu0 0
    %738 = vmatprep.subr.bf16.mxu0 0
    %739 = vmatpush2.bf16.msra.mxu0 0
    %740 = vmatprep.subr.bf16.mxu0 0
    %741 = vmatpush2.bf16.msra.mxu0 0
    %742 = vmatprep.mubr.bf16.mxu0 0
    %743 = vmatmul.mubr.bf16.gmra.mxu0 %v708
    %v744 = vpop.f32.mrf.mxu0
    %v745 = vadd.f32 0.0, %v744
    %v746 = vpop.f32.mrf.mxu0
    %v747 = vpop.f32.mrf.mxu0
    %v748 = vadd.f32 0.0, %v747
    %v749 = vpop.f32.mrf.mxu0
    %750 = vdwg.mxu0
    %v753 = vunpack.c.l.b16 %v570
    %v754 = vunpack.c.l.b16 %v571
    %v755 = vpack.c.b16 %v754, %v753
    %v758 = vsel %vm169, %v569, 0
    %760 = vmatprep.subr.bf16.mxu0 0
    %761 = vmatpush1.bf16.msra.mxu0 0
    %762 = vmatprep.subr.bf16.mxu0 0
    %763 = vmatpush1.bf16.msra.mxu0 0
    %764 = vmatprep.subr.bf16.mxu0 0
    %765 = vmatpush1.bf16.msra.mxu0 0
    %766 = vmatprep.subr.bf16.mxu0 0
    %767 = vmatpush1.bf16.msra.mxu0 0
    %768 = vmatprep.subr.bf16.mxu0 0
    %769 = vmatpush1.bf16.msra.mxu0 0
    %770 = vmatprep.subr.bf16.mxu0 0
    %771 = vmatpush1.bf16.msra.mxu0 0
    %772 = vmatprep.subr.bf16.mxu0 0
    %773 = vmatpush1.bf16.msra.mxu0 0
    %774 = vmatprep.subr.bf16.mxu0 0
    %775 = vmatpush1.bf16.msra.mxu0 %v755
    %776 = vmatprep.subr.bf16.mxu0 0
    %777 = vmatpush2.bf16.msra.mxu0 0
    %778 = vmatprep.subr.bf16.mxu0 0
    %779 = vmatpush2.bf16.msra.mxu0 0
    %780 = vmatprep.subr.bf16.mxu0 0
    %781 = vmatpush2.bf16.msra.mxu0 0
    %782 = vmatprep.subr.bf16.mxu0 0
    %783 = vmatpush2.bf16.msra.mxu0 0
    %784 = vmatprep.subr.bf16.mxu0 0
    %785 = vmatpush2.bf16.msra.mxu0 0
    %786 = vmatprep.subr.bf16.mxu0 0
    %787 = vmatpush2.bf16.msra.mxu0 0
    %788 = vmatprep.subr.bf16.mxu0 0
    %789 = vmatpush2.bf16.msra.mxu0 0
    %790 = vmatprep.subr.bf16.mxu0 0
    %791 = vmatpush2.bf16.msra.mxu0 0
    %792 = vmatprep.mubr.bf16.mxu0 0
    %793 = vmatmul.mubr.bf16.gmra.mxu0 %v758
    %v794 = vpop.f32.mrf.mxu0
    %v795 = vadd.f32 %v745, %v794
    %v796 = vpop.f32.mrf.mxu0
    %v797 = vpop.f32.mrf.mxu0
    %v798 = vadd.f32 %v748, %v797
    %v799 = vpop.f32.mrf.mxu0
    %800 = vdwg.mxu0
    %v801 = vadd.f32 %v347, %v795
    %v802 = vadd.f32 %v348, %v798
    %v803 = vld [vmem:[%s13] sm:$0x1]
    %v805 = vlaneseq
    %v806 = vshrl.u32 %v805, 7
    %v807 = vsub.s32 0, %v806
    %v808 = vrot.slane %v803, %v807
    %v810 = vadd.f32 %v801, %v808
    %v811 = vadd.f32 %v802, %v808
    %v812 = vld [vmem:[%s14] sm:$0x1]
    %v813 = vld [vmem:[%s15] sm:$0x1]
    %v814 = vsel %vm305, %v810, 0.0
    %815 = vadd.xlane.f32.xlu0 %v814
    %v816 = vpop.xlane.xlu0 %815
    %v817 = vsel %vm305, %v811, 0.0
    %818 = vadd.xlane.f32.xlu0 %v817
    %v819 = vpop.xlane.xlu0 %818
    %v820 = vmul.f32 %v816, %v312
    %v821 = vmul.f32 %v819, %v312
    %v822 = vsub.f32 %v810, %v820
    %v823 = vsub.f32 %v811, %v821
    %v824 = vmul.f32 %v822, %v822
    %v825 = vmul.f32 %v823, %v823
    %v826 = vsel %vm305, %v824, 0.0
    %827 = vadd.xlane.f32.xlu0 %v826
    %v828 = vpop.xlane.xlu0 %827
    %v829 = vsel %vm305, %v825, 0.0
    %830 = vadd.xlane.f32.xlu0 %v829
    %v831 = vpop.xlane.xlu0 %830
    %v832 = vmul.f32 %v828, %v312
    %v833 = vmul.f32 %v831, %v312
    %v834 = vadd.f32 %v832, 1e-12
    %v835 = vadd.f32 %v833, 1e-12
    %v836 = vrsqrt.pop %v834
    %v837 = vrsqrt.pop %v835
    %v838 = vmul.f32 %v822, %v836
    %v839 = vmul.f32 %v823, %v837
    %v841 = vlaneseq
    %v842 = vshrl.u32 %v841, 7
    %v843 = vsub.s32 0, %v842
    %v844 = vrot.slane %v812, %v843
    %v846 = vmul.f32 %v838, %v844
    %v847 = vmul.f32 %v839, %v844
    %v849 = vlaneseq
    %v850 = vshrl.u32 %v849, 7
    %v851 = vsub.s32 0, %v850
    %v852 = vrot.slane %v813, %v851
    %v854 = vadd.f32 %v846, %v852
    %v855 = vadd.f32 %v847, %v852
    %v856 = vpack.c.bf16 %v855, %v854
    %v857 = vld [vmem:[%s16] sm:$0xf]
    %v858 = vld [vmem:[%s16 + $0x4] sm:$0xf]
    %v859 = vld [vmem:[%s16 + $0x8] sm:$0xf]
    %v860 = vld [vmem:[%s16 + $0xc] sm:$0xf]
    %v861 = vld [vmem:[%s17] sm:$0x1]
    %v863 = vlaneseq
    %v864 = vshrl.u32 %v863, 7
    %v865 = vsub.s32 0, %v864
    %v866 = vrot.slane %v861, %v865
    %v872 = vunpack.c.l.b16 %v857
    %v873 = vunpack.c.l.b16 %v858
    %v874 = vunpack.c.l.b16 %v859
    %v875 = vunpack.c.l.b16 %v860
    %v876 = vpack.c.b16 %v873, %v872
    %v877 = vpack.c.b16 %v875, %v874
    %v881 = vsel %vm305, %v856, 0
    %883 = vmatprep.subr.bf16.mxu0 0
    %884 = vmatpush1.bf16.msra.mxu0 0
    %885 = vmatprep.subr.bf16.mxu0 0
    %886 = vmatpush1.bf16.msra.mxu0 0
    %887 = vmatprep.subr.bf16.mxu0 0
    %888 = vmatpush1.bf16.msra.mxu0 0
    %889 = vmatprep.subr.bf16.mxu0 0
    %890 = vmatpush1.bf16.msra.mxu0 0
    %891 = vmatprep.subr.bf16.mxu0 0
    %892 = vmatpush1.bf16.msra.mxu0 0
    %893 = vmatprep.subr.bf16.mxu0 0
    %894 = vmatpush1.bf16.msra.mxu0 0
    %895 = vmatprep.subr.bf16.mxu0 0
    %896 = vmatpush1.bf16.msra.mxu0 %v877
    %897 = vmatprep.subr.bf16.mxu0 0
    %898 = vmatpush1.bf16.msra.mxu0 %v876
    %899 = vmatprep.subr.bf16.mxu0 0
    %900 = vmatpush2.bf16.msra.mxu0 0
    %901 = vmatprep.subr.bf16.mxu0 0
    %902 = vmatpush2.bf16.msra.mxu0 0
    %903 = vmatprep.subr.bf16.mxu0 0
    %904 = vmatpush2.bf16.msra.mxu0 0
    %905 = vmatprep.subr.bf16.mxu0 0
    %906 = vmatpush2.bf16.msra.mxu0 0
    %907 = vmatprep.subr.bf16.mxu0 0
    %908 = vmatpush2.bf16.msra.mxu0 0
    %909 = vmatprep.subr.bf16.mxu0 0
    %910 = vmatpush2.bf16.msra.mxu0 0
    %911 = vmatprep.subr.bf16.mxu0 0
    %912 = vmatpush2.bf16.msra.mxu0 0
    %913 = vmatprep.subr.bf16.mxu0 0
    %914 = vmatpush2.bf16.msra.mxu0 0
    %915 = vmatprep.mubr.bf16.mxu0 0
    %916 = vmatmul.mubr.bf16.gmra.mxu0 %v881
    %v917 = vpop.f32.mrf.mxu0
    %v918 = vadd.f32 %v866, %v917
    %v919 = vpop.f32.mrf.mxu0
    %v920 = vpop.f32.mrf.mxu0
    %v921 = vadd.f32 %v866, %v920
    %v922 = vpop.f32.mrf.mxu0
    %923 = vdwg.mxu0
    %v924 = vmul.f32 %v918, 0.5
    %v925 = vmul.f32 %v921, 0.5
    %v926 = vmul.f32 %v918, 0.044715
    %v927 = vmul.f32 %v921, 0.044715
    %v928 = vmul.f32 %v926, %v918
    %v929 = vmul.f32 %v927, %v921
    %v930 = vmul.f32 %v928, %v918
    %v931 = vmul.f32 %v929, %v921
    %v932 = vadd.f32 %v918, %v930
    %v933 = vadd.f32 %v921, %v931
    %v934 = vmul.f32 %v932, 0.7978846
    %v935 = vmul.f32 %v933, 0.7978846
    %v936 = vtanh.pop %v934
    %v937 = vtanh.pop %v935
    %v938 = vadd.f32 %v936, 1.0
    %v939 = vadd.f32 %v937, 1.0
    %v940 = vmul.f32 %v924, %v938
    %v941 = vmul.f32 %v925, %v939
    %v942 = vpack.c.bf16 %v941, %v940
    %v943 = vld [vmem:[%s18] sm:$0xf]
    %v944 = vld [vmem:[%s18 + $0x4] sm:$0xf]
    %v945 = vld [vmem:[%s18 + $0x8] sm:$0xf]
    %v946 = vld [vmem:[%s18 + $0xc] sm:$0xf]
    %v947 = vld [vmem:[%s18 + $0x10] sm:$0xf]
    %v948 = vld [vmem:[%s18 + $0x14] sm:$0xf]
    %v949 = vld [vmem:[%s18 + $0x18] sm:$0xf]
    %v950 = vld [vmem:[%s18 + $0x1c] sm:$0xf]
    %v951 = vld [vmem:[%s19] sm:$0x1]
    %v953 = vlaneseq
    %v954 = vshrl.u32 %v953, 7
    %v955 = vsub.s32 0, %v954
    %v956 = vrot.slane %v951, %v955
    %v966 = vunpack.c.l.b16 %v943
    %v967 = vunpack.c.l.b16 %v944
    %v968 = vunpack.c.l.b16 %v945
    %v969 = vunpack.c.l.b16 %v946
    %v970 = vunpack.c.l.b16 %v947
    %v971 = vunpack.c.l.b16 %v948
    %v972 = vunpack.c.l.b16 %v949
    %v973 = vunpack.c.l.b16 %v950
    %v974 = vpack.c.b16 %v967, %v966
    %v975 = vpack.c.b16 %v969, %v968
    %v976 = vpack.c.b16 %v971, %v970
    %v977 = vpack.c.b16 %v973, %v972
    %vm982 = vcmask 523264
    %v984 = vsel %vm982, %v942, 0
    %986 = vmatprep.subr.bf16.mxu0 0
    %987 = vmatpush1.bf16.msra.mxu0 0
    %988 = vmatprep.subr.bf16.mxu0 0
    %989 = vmatpush1.bf16.msra.mxu0 0
    %990 = vmatprep.subr.bf16.mxu0 0
    %991 = vmatpush1.bf16.msra.mxu0 0
    %992 = vmatprep.subr.bf16.mxu0 0
    %993 = vmatpush1.bf16.msra.mxu0 0
    %994 = vmatprep.subr.bf16.mxu0 0
    %995 = vmatpush1.bf16.msra.mxu0 %v977
    %996 = vmatprep.subr.bf16.mxu0 0
    %997 = vmatpush1.bf16.msra.mxu0 %v976
    %998 = vmatprep.subr.bf16.mxu0 0
    %999 = vmatpush1.bf16.msra.mxu0 %v975
    %1000 = vmatprep.subr.bf16.mxu0 0
    %1001 = vmatpush1.bf16.msra.mxu0 %v974
    %1002 = vmatprep.subr.bf16.mxu0 0
    %1003 = vmatpush2.bf16.msra.mxu0 0
    %1004 = vmatprep.subr.bf16.mxu0 0
    %1005 = vmatpush2.bf16.msra.mxu0 0
    %1006 = vmatprep.subr.bf16.mxu0 0
    %1007 = vmatpush2.bf16.msra.mxu0 0
    %1008 = vmatprep.subr.bf16.mxu0 0
    %1009 = vmatpush2.bf16.msra.mxu0 0
    %1010 = vmatprep.subr.bf16.mxu0 0
    %1011 = vmatpush2.bf16.msra.mxu0 0
    %1012 = vmatprep.subr.bf16.mxu0 0
    %1013 = vmatpush2.bf16.msra.mxu0 0
    %1014 = vmatprep.subr.bf16.mxu0 0
    %1015 = vmatpush2.bf16.msra.mxu0 0
    %1016 = vmatprep.subr.bf16.mxu0 0
    %1017 = vmatpush2.bf16.msra.mxu0 0
    %1018 = vmatprep.mubr.bf16.mxu0 0
    %1019 = vmatmul.mubr.bf16.gmra.mxu0 %v984
    %v1020 = vpop.f32.mrf.mxu0
    %v1021 = vadd.f32 %v956, %v1020
    %v1022 = vpop.f32.mrf.mxu0
    %v1023 = vpop.f32.mrf.mxu0
    %v1024 = vadd.f32 %v956, %v1023
    %v1025 = vpop.f32.mrf.mxu0
    %1026 = vdwg.mxu0
    %v1027 = vadd.f32 %v854, %v1021
    %v1028 = vadd.f32 %v855, %v1024
    %v1029 = vld [vmem:[%s20] sm:$0x1]
    %v1030 = vld [vmem:[%s21] sm:$0x1]
    %v1031 = vsel %vm305, %v1027, 0.0
    %1032 = vadd.xlane.f32.xlu0 %v1031
    %v1033 = vpop.xlane.xlu0 %1032
    %v1034 = vsel %vm305, %v1028, 0.0
    %1035 = vadd.xlane.f32.xlu0 %v1034
    %v1036 = vpop.xlane.xlu0 %1035
    %v1037 = vmul.f32 %v1033, %v312
    %v1038 = vmul.f32 %v1036, %v312
    %v1039 = vsub.f32 %v1027, %v1037
    %v1040 = vsub.f32 %v1028, %v1038
    %v1041 = vmul.f32 %v1039, %v1039
    %v1042 = vmul.f32 %v1040, %v1040
    %v1043 = vsel %vm305, %v1041, 0.0
    %1044 = vadd.xlane.f32.xlu0 %v1043
    %v1045 = vpop.xlane.xlu0 %1044
    %v1046 = vsel %vm305, %v1042, 0.0
    %1047 = vadd.xlane.f32.xlu0 %v1046
    %v1048 = vpop.xlane.xlu0 %1047
    %v1049 = vmul.f32 %v1045, %v312
    %v1050 = vmul.f32 %v1048, %v312
    %v1051 = vadd.f32 %v1049, 1e-12
    %v1052 = vadd.f32 %v1050, 1e-12
    %v1053 = vrsqrt.pop %v1051
    %v1054 = vrsqrt.pop %v1052
    %v1055 = vmul.f32 %v1039, %v1053
    %v1056 = vmul.f32 %v1040, %v1054
    %v1058 = vlaneseq
    %v1059 = vshrl.u32 %v1058, 7
    %v1060 = vsub.s32 0, %v1059
    %v1061 = vrot.slane %v1029, %v1060
    %v1063 = vmul.f32 %v1055, %v1061
    %v1064 = vmul.f32 %v1056, %v1061
    %v1066 = vlaneseq
    %v1067 = vshrl.u32 %v1066, 7
    %v1068 = vsub.s32 0, %v1067
    %v1069 = vrot.slane %v1030, %v1068
    %v1071 = vadd.f32 %v1063, %v1069
    %v1072 = vadd.f32 %v1064, %v1069
    %v1073 = vpack.c.bf16 %v1072, %v1071
    %s1074 = scalar_lea.vmem %s10, 16
    %v1075 = vld [vmem:[%s1074] sm:$0xf]
    %v1076 = vld [vmem:[%s1074 + $0x4] sm:$0xf]
    %v1077 = vld [vmem:[%s1074 + $0x8] sm:$0xf]
    %v1078 = vld [vmem:[%s1074 + $0xc] sm:$0xf]
    %s1079 = scalar_lea.vmem %s11, 1
    %v1080 = vld [vmem:[%s1079] sm:$0x1]
    %v1082 = vlaneseq
    %v1083 = vshrl.u32 %v1082, 7
    %v1084 = vsub.s32 0, %v1083
    %v1085 = vrot.slane %v1080, %v1084
    %v1091 = vunpack.c.l.b16 %v1075
    %v1092 = vunpack.c.l.b16 %v1076
    %v1093 = vunpack.c.l.b16 %v1077
    %v1094 = vunpack.c.l.b16 %v1078
    %v1095 = vpack.c.b16 %v1092, %v1091
    %v1096 = vpack.c.b16 %v1094, %v1093
    %v1100 = vsel %vm305, %v1073, 0
    %1102 = vmatprep.subr.bf16.mxu0 0
    %1103 = vmatpush1.bf16.msra.mxu0 0
    %1104 = vmatprep.subr.bf16.mxu0 0
    %1105 = vmatpush1.bf16.msra.mxu0 0
    %1106 = vmatprep.subr.bf16.mxu0 0
    %1107 = vmatpush1.bf16.msra.mxu0 0
    %1108 = vmatprep.subr.bf16.mxu0 0
    %1109 = vmatpush1.bf16.msra.mxu0 0
    %1110 = vmatprep.subr.bf16.mxu0 0
    %1111 = vmatpush1.bf16.msra.mxu0 0
    %1112 = vmatprep.subr.bf16.mxu0 0
    %1113 = vmatpush1.bf16.msra.mxu0 0
    %1114 = vmatprep.subr.bf16.mxu0 0
    %1115 = vmatpush1.bf16.msra.mxu0 %v1096
    %1116 = vmatprep.subr.bf16.mxu0 0
    %1117 = vmatpush1.bf16.msra.mxu0 %v1095
    %1118 = vmatprep.subr.bf16.mxu0 0
    %1119 = vmatpush2.bf16.msra.mxu0 0
    %1120 = vmatprep.subr.bf16.mxu0 0
    %1121 = vmatpush2.bf16.msra.mxu0 0
    %1122 = vmatprep.subr.bf16.mxu0 0
    %1123 = vmatpush2.bf16.msra.mxu0 0
    %1124 = vmatprep.subr.bf16.mxu0 0
    %1125 = vmatpush2.bf16.msra.mxu0 0
    %1126 = vmatprep.subr.bf16.mxu0 0
    %1127 = vmatpush2.bf16.msra.mxu0 0
    %1128 = vmatprep.subr.bf16.mxu0 0
    %1129 = vmatpush2.bf16.msra.mxu0 0
    %1130 = vmatprep.subr.bf16.mxu0 0
    %1131 = vmatpush2.bf16.msra.mxu0 0
    %1132 = vmatprep.subr.bf16.mxu0 0
    %1133 = vmatpush2.bf16.msra.mxu0 0
    %1134 = vmatprep.mubr.bf16.mxu0 0
    %1135 = vmatmul.mubr.bf16.gmra.mxu0 %v1100
    %v1136 = vpop.f32.mrf.mxu0
    %v1137 = vadd.f32 %v1085, %v1136
    %v1138 = vpop.f32.mrf.mxu0
    %v1139 = vpop.f32.mrf.mxu0
    %v1140 = vadd.f32 %v1085, %v1139
    %v1141 = vpop.f32.mrf.mxu0
    %1142 = vdwg.mxu0
    %v1143 = vpack.c.bf16 %v1140, %v1137
    %1145 = vrot.lane.b32.xlu0 %v1143, 96
    %v1146 = vpop.permute.xlu0 %1145
    %v1148 = vsel %vm169, %v1143, 0
    %v1151 = vsel %vm169, %v1146, 0
    %1153 = vmatprep.subr.bf16.mxu0 0
    %1154 = vmatpush1.bf16.xpose.msra.mxu0 0
    %1155 = vmatprep.subr.bf16.mxu0 0
    %1156 = vmatpush1.bf16.xpose.msra.mxu0 0
    %1157 = vmatprep.subr.bf16.mxu0 0
    %1158 = vmatpush1.bf16.xpose.msra.mxu0 0
    %1159 = vmatprep.subr.bf16.mxu0 0
    %1160 = vmatpush1.bf16.xpose.msra.mxu0 0
    %1161 = vmatprep.subr.bf16.mxu0 0
    %1162 = vmatpush1.bf16.xpose.msra.mxu0 0
    %1163 = vmatprep.subr.bf16.mxu0 0
    %1164 = vmatpush1.bf16.xpose.msra.mxu0 0
    %1165 = vmatprep.subr.bf16.mxu0 0
    %1166 = vmatpush1.bf16.xpose.msra.mxu0 0
    %1167 = vmatprep.subr.bf16.mxu0 0
    %1168 = vmatpush1.bf16.xpose.msra.mxu0 %v1151
    %1169 = vmatprep.subr.bf16.mxu0 0
    %1170 = vmatpush2.bf16.xpose.msra.mxu0 0
    %1171 = vmatprep.subr.bf16.mxu0 0
    %1172 = vmatpush2.bf16.xpose.msra.mxu0 0
    %1173 = vmatprep.subr.bf16.mxu0 0
    %1174 = vmatpush2.bf16.xpose.msra.mxu0 0
    %1175 = vmatprep.subr.bf16.mxu0 0
    %1176 = vmatpush2.bf16.xpose.msra.mxu0 0
    %1177 = vmatprep.subr.bf16.mxu0 0
    %1178 = vmatpush2.bf16.xpose.msra.mxu0 0
    %1179 = vmatprep.subr.bf16.mxu0 0
    %1180 = vmatpush2.bf16.xpose.msra.mxu0 0
    %1181 = vmatprep.subr.bf16.mxu0 0
    %1182 = vmatpush2.bf16.xpose.msra.mxu0 0
    %1183 = vmatprep.subr.bf16.mxu0 0
    %1184 = vmatpush2.bf16.xpose.msra.mxu0 0
    %1185 = vmatprep.mubr.bf16.mxu0 0
    %1186 = vmatmul.mubr.bf16.gmra.mxu0 %v1148
    %v1187 = vpop.f32.mrf.mxu0
    %v1188 = vadd.f32 0.0, %v1187
    %v1189 = vpop.f32.mrf.mxu0
    %v1190 = vpop.f32.mrf.mxu0
    %v1191 = vadd.f32 0.0, %v1190
    %v1192 = vpop.f32.mrf.mxu0
    %1193 = vdwg.mxu0
    %v1194 = vmul.f32 %v1188, 0.25
    %v1195 = vmul.f32 %v1191, 0.25
    %v1196 = vadd.f32 %v1194, %v374
    %v1197 = vadd.f32 %v1195, %v375
    %v1198 = vsel %vm169, %v1196, -inf
    %1199 = vmax.xlane.f32.xlu0 %v1198
    %v1200 = vpop.xlane.xlu0 %1199
    %v1201 = vsel %vm169, %v1197, -inf
    %1202 = vmax.xlane.f32.xlu0 %v1201
    %v1203 = vpop.xlane.xlu0 %1202
    %v1204 = vsub.f32 %v1196, %v1200
    %v1205 = vsub.f32 %v1197, %v1203
    %v1206 = vmul.f32 %v1204, 1.442695
    %v1207 = vpow.pop %v1206
    %v1208 = vmul.f32 %v1205, 1.442695
    %v1209 = vpow.pop %v1208
    %v1210 = vsel %vm169, %v1207, 0.0
    %1211 = vadd.xlane.f32.xlu0 %v1210
    %v1212 = vpop.xlane.xlu0 %1211
    %v1213 = vsel %vm169, %v1209, 0.0
    %1214 = vadd.xlane.f32.xlu0 %v1213
    %v1215 = vpop.xlane.xlu0 %1214
    %v1216 = vrcp.pop %v1212
    %v1217 = vrcp.pop %v1215
    %v1218 = vmul.f32 %v1207, %v1216
    %v1219 = vmul.f32 %v1209, %v1217
    %v1220 = vpack.c.bf16 %v1219, %v1218
    %1221 = vrot.lane.b32.xlu0 %v1143, 64
    %v1222 = vpop.permute.xlu0 %1221
    %v1225 = vsel %vm169, %v1220, 0
    %1227 = vmatprep.subr.bf16.mxu0 0
    %1228 = vmatpush1.bf16.msra.mxu0 0
    %1229 = vmatprep.subr.bf16.mxu0 0
    %1230 = vmatpush1.bf16.msra.mxu0 0
    %1231 = vmatprep.subr.bf16.mxu0 0
    %1232 = vmatpush1.bf16.msra.mxu0 0
    %1233 = vmatprep.subr.bf16.mxu0 0
    %1234 = vmatpush1.bf16.msra.mxu0 0
    %1235 = vmatprep.subr.bf16.mxu0 0
    %1236 = vmatpush1.bf16.msra.mxu0 0
    %1237 = vmatprep.subr.bf16.mxu0 0
    %1238 = vmatpush1.bf16.msra.mxu0 0
    %1239 = vmatprep.subr.bf16.mxu0 0
    %1240 = vmatpush1.bf16.msra.mxu0 0
    %1241 = vmatprep.subr.bf16.mxu0 0
    %1242 = vmatpush1.bf16.msra.mxu0 %v1222
    %1243 = vmatprep.subr.bf16.mxu0 0
    %1244 = vmatpush2.bf16.msra.mxu0 0
    %1245 = vmatprep.subr.bf16.mxu0 0
    %1246 = vmatpush2.bf16.msra.mxu0 0
    %1247 = vmatprep.subr.bf16.mxu0 0
    %1248 = vmatpush2.bf16.msra.mxu0 0
    %1249 = vmatprep.subr.bf16.mxu0 0
    %1250 = vmatpush2.bf16.msra.mxu0 0
    %1251 = vmatprep.subr.bf16.mxu0 0
    %1252 = vmatpush2.bf16.msra.mxu0 0
    %1253 = vmatprep.subr.bf16.mxu0 0
    %1254 = vmatpush2.bf16.msra.mxu0 0
    %1255 = vmatprep.subr.bf16.mxu0 0
    %1256 = vmatpush2.bf16.msra.mxu0 0
    %1257 = vmatprep.subr.bf16.mxu0 0
    %1258 = vmatpush2.bf16.msra.mxu0 0
    %1259 = vmatprep.mubr.bf16.mxu0 0
    %1260 = vmatmul.mubr.bf16.gmra.mxu0 %v1225
    %v1261 = vpop.f32.mrf.mxu0
    %v1262 = vadd.f32 0.0, %v1261
    %v1263 = vpop.f32.mrf.mxu0
    %v1264 = vpop.f32.mrf.mxu0
    %v1265 = vadd.f32 0.0, %v1264
    %v1266 = vpop.f32.mrf.mxu0
    %1267 = vdwg.mxu0
    %v1268 = vpack.c.bf16 %v1265, %v1262
    %s1269 = scalar_lea.vmem %s12, 16
    %v1270 = vld [vmem:[%s1269] sm:$0xf]
    %v1271 = vld [vmem:[%s1269 + $0x4] sm:$0xf]
    %1272 = vrot.lane.b32.xlu0 %v1143, 112
    %v1273 = vpop.permute.xlu0 %1272
    %1274 = vrot.lane.b32.xlu0 %v1143, 80
    %v1275 = vpop.permute.xlu0 %1274
    %v1277 = vsel %vm169, %v1273, 0
    %v1280 = vsel %vm169, %v1275, 0
    %1282 = vmatprep.subr.bf16.mxu0 0
    %1283 = vmatpush1.bf16.xpose.msra.mxu0 0
    %1284 = vmatprep.subr.bf16.mxu0 0
    %1285 = vmatpush1.bf16.xpose.msra.mxu0 0
    %1286 = vmatprep.subr.bf16.mxu0 0
    %1287 = vmatpush1.bf16.xpose.msra.mxu0 0
    %1288 = vmatprep.subr.bf16.mxu0 0
    %1289 = vmatpush1.bf16.xpose.msra.mxu0 0
    %1290 = vmatprep.subr.bf16.mxu0 0
    %1291 = vmatpush1.bf16.xpose.msra.mxu0 0
    %1292 = vmatprep.subr.bf16.mxu0 0
    %1293 = vmatpush1.bf16.xpose.msra.mxu0 0
    %1294 = vmatprep.subr.bf16.mxu0 0
    %1295 = vmatpush1.bf16.xpose.msra.mxu0 0
    %1296 = vmatprep.subr.bf16.mxu0 0
    %1297 = vmatpush1.bf16.xpose.msra.mxu0 %v1280
    %1298 = vmatprep.subr.bf16.mxu0 0
    %1299 = vmatpush2.bf16.xpose.msra.mxu0 0
    %1300 = vmatprep.subr.bf16.mxu0 0
    %1301 = vmatpush2.bf16.xpose.msra.mxu0 0
    %1302 = vmatprep.subr.bf16.mxu0 0
    %1303 = vmatpush2.bf16.xpose.msra.mxu0 0
    %1304 = vmatprep.subr.bf16.mxu0 0
    %1305 = vmatpush2.bf16.xpose.msra.mxu0 0
    %1306 = vmatprep.subr.bf16.mxu0 0
    %1307 = vmatpush2.bf16.xpose.msra.mxu0 0
    %1308 = vmatprep.subr.bf16.mxu0 0
    %1309 = vmatpush2.bf16.xpose.msra.mxu0 0
    %1310 = vmatprep.subr.bf16.mxu0 0
    %1311 = vmatpush2.bf16.xpose.msra.mxu0 0
    %1312 = vmatprep.subr.bf16.mxu0 0
    %1313 = vmatpush2.bf16.xpose.msra.mxu0 0
    %1314 = vmatprep.mubr.bf16.mxu0 0
    %1315 = vmatmul.mubr.bf16.gmra.mxu0 %v1277
    %v1316 = vpop.f32.mrf.mxu0
    %v1317 = vadd.f32 0.0, %v1316
    %v1318 = vpop.f32.mrf.mxu0
    %v1319 = vpop.f32.mrf.mxu0
    %v1320 = vadd.f32 0.0, %v1319
    %v1321 = vpop.f32.mrf.mxu0
    %1322 = vdwg.mxu0
    %v1323 = vmul.f32 %v1317, 0.25
    %v1324 = vmul.f32 %v1320, 0.25
    %v1325 = vadd.f32 %v1323, %v374
    %v1326 = vadd.f32 %v1324, %v375
    %v1327 = vsel %vm169, %v1325, -inf
    %1328 = vmax.xlane.f32.xlu0 %v1327
    %v1329 = vpop.xlane.xlu0 %1328
    %v1330 = vsel %vm169, %v1326, -inf
    %1331 = vmax.xlane.f32.xlu0 %v1330
    %v1332 = vpop.xlane.xlu0 %1331
    %v1333 = vsub.f32 %v1325, %v1329
    %v1334 = vsub.f32 %v1326, %v1332
    %v1335 = vmul.f32 %v1333, 1.442695
    %v1336 = vpow.pop %v1335
    %v1337 = vmul.f32 %v1334, 1.442695
    %v1338 = vpow.pop %v1337
    %v1339 = vsel %vm169, %v1336, 0.0
    %1340 = vadd.xlane.f32.xlu0 %v1339
    %v1341 = vpop.xlane.xlu0 %1340
    %v1342 = vsel %vm169, %v1338, 0.0
    %1343 = vadd.xlane.f32.xlu0 %v1342
    %v1344 = vpop.xlane.xlu0 %1343
    %v1345 = vrcp.pop %v1341
    %v1346 = vrcp.pop %v1344
    %v1347 = vmul.f32 %v1336, %v1345
    %v1348 = vmul.f32 %v1338, %v1346
    %v1349 = vpack.c.bf16 %v1348, %v1347
    %1350 = vrot.lane.b32.xlu0 %v1143, 48
    %v1351 = vpop.permute.xlu0 %1350
    %v1354 = vsel %vm169, %v1349, 0
    %1356 = vmatprep.subr.bf16.mxu0 0
    %1357 = vmatpush1.bf16.msra.mxu0 0
    %1358 = vmatprep.subr.bf16.mxu0 0
    %1359 = vmatpush1.bf16.msra.mxu0 0
    %1360 = vmatprep.subr.bf16.mxu0 0
    %1361 = vmatpush1.bf16.msra.mxu0 0
    %1362 = vmatprep.subr.bf16.mxu0 0
    %1363 = vmatpush1.bf16.msra.mxu0 0
    %1364 = vmatprep.subr.bf16.mxu0 0
    %1365 = vmatpush1.bf16.msra.mxu0 0
    %1366 = vmatprep.subr.bf16.mxu0 0
    %1367 = vmatpush1.bf16.msra.mxu0 0
    %1368 = vmatprep.subr.bf16.mxu0 0
    %1369 = vmatpush1.bf16.msra.mxu0 0
    %1370 = vmatprep.subr.bf16.mxu0 0
    %1371 = vmatpush1.bf16.msra.mxu0 %v1351
    %1372 = vmatprep.subr.bf16.mxu0 0
    %1373 = vmatpush2.bf16.msra.mxu0 0
    %1374 = vmatprep.subr.bf16.mxu0 0
    %1375 = vmatpush2.bf16.msra.mxu0 0
    %1376 = vmatprep.subr.bf16.mxu0 0
    %1377 = vmatpush2.bf16.msra.mxu0 0
    %1378 = vmatprep.subr.bf16.mxu0 0
    %1379 = vmatpush2.bf16.msra.mxu0 0
    %1380 = vmatprep.subr.bf16.mxu0 0
    %1381 = vmatpush2.bf16.msra.mxu0 0
    %1382 = vmatprep.subr.bf16.mxu0 0
    %1383 = vmatpush2.bf16.msra.mxu0 0
    %1384 = vmatprep.subr.bf16.mxu0 0
    %1385 = vmatpush2.bf16.msra.mxu0 0
    %1386 = vmatprep.subr.bf16.mxu0 0
    %1387 = vmatpush2.bf16.msra.mxu0 0
    %1388 = vmatprep.mubr.bf16.mxu0 0
    %1389 = vmatmul.mubr.bf16.gmra.mxu0 %v1354
    %v1390 = vpop.f32.mrf.mxu0
    %v1391 = vadd.f32 0.0, %v1390
    %v1392 = vpop.f32.mrf.mxu0
    %v1393 = vpop.f32.mrf.mxu0
    %v1394 = vadd.f32 0.0, %v1393
    %v1395 = vpop.f32.mrf.mxu0
    %1396 = vdwg.mxu0
    %v1397 = vpack.c.bf16 %v1394, %v1391
    %s1398 = scalar_lea.vmem %s12, 24
    %v1399 = vld [vmem:[%s1398] sm:$0xf]
    %v1400 = vld [vmem:[%s1398 + $0x4] sm:$0xf]
    %v1403 = vunpack.c.l.b16 %v1399
    %v1404 = vunpack.c.l.b16 %v1400
    %v1405 = vpack.c.b16 %v1404, %v1403
    %v1408 = vsel %vm169, %v1397, 0
    %1410 = vmatprep.subr.bf16.mxu0 0
    %1411 = vmatpush1.bf16.msra.mxu0 0
    %1412 = vmatprep.subr.bf16.mxu0 0
    %1413 = vmatpush1.bf16.msra.mxu0 0
    %1414 = vmatprep.subr.bf16.mxu0 0
    %1415 = vmatpush1.bf16.msra.mxu0 0
    %1416 = vmatprep.subr.bf16.mxu0 0
    %1417 = vmatpush1.bf16.msra.mxu0 0
    %1418 = vmatprep.subr.bf16.mxu0 0
    %1419 = vmatpush1.bf16.msra.mxu0 0
    %1420 = vmatprep.subr.bf16.mxu0 0
    %1421 = vmatpush1.bf16.msra.mxu0 0
    %1422 = vmatprep.subr.bf16.mxu0 0
    %1423 = vmatpush1.bf16.msra.mxu0 0
    %1424 = vmatprep.subr.bf16.mxu0 0
    %1425 = vmatpush1.bf16.msra.mxu0 %v1405
    %1426 = vmatprep.subr.bf16.mxu0 0
    %1427 = vmatpush2.bf16.msra.mxu0 0
    %1428 = vmatprep.subr.bf16.mxu0 0
    %1429 = vmatpush2.bf16.msra.mxu0 0
    %1430 = vmatprep.subr.bf16.mxu0 0
    %1431 = vmatpush2.bf16.msra.mxu0 0
    %1432 = vmatprep.subr.bf16.mxu0 0
    %1433 = vmatpush2.bf16.msra.mxu0 0
    %1434 = vmatprep.subr.bf16.mxu0 0
    %1435 = vmatpush2.bf16.msra.mxu0 0
    %1436 = vmatprep.subr.bf16.mxu0 0
    %1437 = vmatpush2.bf16.msra.mxu0 0
    %1438 = vmatprep.subr.bf16.mxu0 0
    %1439 = vmatpush2.bf16.msra.mxu0 0
    %1440 = vmatprep.subr.bf16.mxu0 0
    %1441 = vmatpush2.bf16.msra.mxu0 0
    %1442 = vmatprep.mubr.bf16.mxu0 0
    %1443 = vmatmul.mubr.bf16.gmra.mxu0 %v1408
    %v1444 = vpop.f32.mrf.mxu0
    %v1445 = vadd.f32 0.0, %v1444
    %v1446 = vpop.f32.mrf.mxu0
    %v1447 = vpop.f32.mrf.mxu0
    %v1448 = vadd.f32 0.0, %v1447
    %v1449 = vpop.f32.mrf.mxu0
    %1450 = vdwg.mxu0
    %v1453 = vunpack.c.l.b16 %v1270
    %v1454 = vunpack.c.l.b16 %v1271
    %v1455 = vpack.c.b16 %v1454, %v1453
    %v1458 = vsel %vm169, %v1268, 0
    %1460 = vmatprep.subr.bf16.mxu0 0
    %1461 = vmatpush1.bf16.msra.mxu0 0
    %1462 = vmatprep.subr.bf16.mxu0 0
    %1463 = vmatpush1.bf16.msra.mxu0 0
    %1464 = vmatprep.subr.bf16.mxu0 0
    %1465 = vmatpush1.bf16.msra.mxu0 0
    %1466 = vmatprep.subr.bf16.mxu0 0
    %1467 = vmatpush1.bf16.msra.mxu0 0
    %1468 = vmatprep.subr.bf16.mxu0 0
    %1469 = vmatpush1.bf16.msra.mxu0 0
    %1470 = vmatprep.subr.bf16.mxu0 0
    %1471 = vmatpush1.bf16.msra.mxu0 0
    %1472 = vmatprep.subr.bf16.mxu0 0
    %1473 = vmatpush1.bf16.msra.mxu0 0
    %1474 = vmatprep.subr.bf16.mxu0 0
    %1475 = vmatpush1.bf16.msra.mxu0 %v1455
    %1476 = vmatprep.subr.bf16.mxu0 0
    %1477 = vmatpush2.bf16.msra.mxu0 0
    %1478 = vmatprep.subr.bf16.mxu0 0
    %1479 = vmatpush2.bf16.msra.mxu0 0
    %1480 = vmatprep.subr.bf16.mxu0 0
    %1481 = vmatpush2.bf16.msra.mxu0 0
    %1482 = vmatprep.subr.bf16.mxu0 0
    %1483 = vmatpush2.bf16.msra.mxu0 0
    %1484 = vmatprep.subr.bf16.mxu0 0
    %1485 = vmatpush2.bf16.msra.mxu0 0
    %1486 = vmatprep.subr.bf16.mxu0 0
    %1487 = vmatpush2.bf16.msra.mxu0 0
    %1488 = vmatprep.subr.bf16.mxu0 0
    %1489 = vmatpush2.bf16.msra.mxu0 0
    %1490 = vmatprep.subr.bf16.mxu0 0
    %1491 = vmatpush2.bf16.msra.mxu0 0
    %1492 = vmatprep.mubr.bf16.mxu0 0
    %1493 = vmatmul.mubr.bf16.gmra.mxu0 %v1458
    %v1494 = vpop.f32.mrf.mxu0
    %v1495 = vadd.f32 %v1445, %v1494
    %v1496 = vpop.f32.mrf.mxu0
    %v1497 = vpop.f32.mrf.mxu0
    %v1498 = vadd.f32 %v1448, %v1497
    %v1499 = vpop.f32.mrf.mxu0
    %1500 = vdwg.mxu0
    %v1501 = vadd.f32 %v1071, %v1495
    %v1502 = vadd.f32 %v1072, %v1498
    %s1503 = scalar_lea.vmem %s13, 1
    %v1504 = vld [vmem:[%s1503] sm:$0x1]
    %v1506 = vlaneseq
    %v1507 = vshrl.u32 %v1506, 7
    %v1508 = vsub.s32 0, %v1507
    %v1509 = vrot.slane %v1504, %v1508
    %v1511 = vadd.f32 %v1501, %v1509
    %v1512 = vadd.f32 %v1502, %v1509
    %s1513 = scalar_lea.vmem %s14, 1
    %v1514 = vld [vmem:[%s1513] sm:$0x1]
    %s1515 = scalar_lea.vmem %s15, 1
    %v1516 = vld [vmem:[%s1515] sm:$0x1]
    %v1517 = vsel %vm305, %v1511, 0.0
    %1518 = vadd.xlane.f32.xlu0 %v1517
    %v1519 = vpop.xlane.xlu0 %1518
    %v1520 = vsel %vm305, %v1512, 0.0
    %1521 = vadd.xlane.f32.xlu0 %v1520
    %v1522 = vpop.xlane.xlu0 %1521
    %v1523 = vmul.f32 %v1519, %v312
    %v1524 = vmul.f32 %v1522, %v312
    %v1525 = vsub.f32 %v1511, %v1523
    %v1526 = vsub.f32 %v1512, %v1524
    %v1527 = vmul.f32 %v1525, %v1525
    %v1528 = vmul.f32 %v1526, %v1526
    %v1529 = vsel %vm305, %v1527, 0.0
    %1530 = vadd.xlane.f32.xlu0 %v1529
    %v1531 = vpop.xlane.xlu0 %1530
    %v1532 = vsel %vm305, %v1528, 0.0
    %1533 = vadd.xlane.f32.xlu0 %v1532
    %v1534 = vpop.xlane.xlu0 %1533
    %v1535 = vmul.f32 %v1531, %v312
    %v1536 = vmul.f32 %v1534, %v312
    %v1537 = vadd.f32 %v1535, 1e-12
    %v1538 = vadd.f32 %v1536, 1e-12
    %v1539 = vrsqrt.pop %v1537
    %v1540 = vrsqrt.pop %v1538
    %v1541 = vmul.f32 %v1525, %v1539
    %v1542 = vmul.f32 %v1526, %v1540
    %v1544 = vlaneseq
    %v1545 = vshrl.u32 %v1544, 7
    %v1546 = vsub.s32 0, %v1545
    %v1547 = vrot.slane %v1514, %v1546
    %v1549 = vmul.f32 %v1541, %v1547
    %v1550 = vmul.f32 %v1542, %v1547
    %v1552 = vlaneseq
    %v1553 = vshrl.u32 %v1552, 7
    %v1554 = vsub.s32 0, %v1553
    %v1555 = vrot.slane %v1516, %v1554
    %v1557 = vadd.f32 %v1549, %v1555
    %v1558 = vadd.f32 %v1550, %v1555
    %v1559 = vpack.c.bf16 %v1558, %v1557
    %s1560 = scalar_lea.vmem %s16, 16
    %v1561 = vld [vmem:[%s1560] sm:$0xf]
    %v1562 = vld [vmem:[%s1560 + $0x4] sm:$0xf]
    %v1563 = vld [vmem:[%s1560 + $0x8] sm:$0xf]
    %v1564 = vld [vmem:[%s1560 + $0xc] sm:$0xf]
    %s1565 = scalar_lea.vmem %s17, 1
    %v1566 = vld [vmem:[%s1565] sm:$0x1]
    %v1568 = vlaneseq
    %v1569 = vshrl.u32 %v1568, 7
    %v1570 = vsub.s32 0, %v1569
    %v1571 = vrot.slane %v1566, %v1570
    %v1577 = vunpack.c.l.b16 %v1561
    %v1578 = vunpack.c.l.b16 %v1562
    %v1579 = vunpack.c.l.b16 %v1563
    %v1580 = vunpack.c.l.b16 %v1564
    %v1581 = vpack.c.b16 %v1578, %v1577
    %v1582 = vpack.c.b16 %v1580, %v1579
    %v1586 = vsel %vm305, %v1559, 0
    %1588 = vmatprep.subr.bf16.mxu0 0
    %1589 = vmatpush1.bf16.msra.mxu0 0
    %1590 = vmatprep.subr.bf16.mxu0 0
    %1591 = vmatpush1.bf16.msra.mxu0 0
    %1592 = vmatprep.subr.bf16.mxu0 0
    %1593 = vmatpush1.bf16.msra.mxu0 0
    %1594 = vmatprep.subr.bf16.mxu0 0
    %1595 = vmatpush1.bf16.msra.mxu0 0
    %1596 = vmatprep.subr.bf16.mxu0 0
    %1597 = vmatpush1.bf16.msra.mxu0 0
    %1598 = vmatprep.subr.bf16.mxu0 0
    %1599 = vmatpush1.bf16.msra.mxu0 0
    %1600 = vmatprep.subr.bf16.mxu0 0
    %1601 = vmatpush1.bf16.msra.mxu0 %v1582
    %1602 = vmatprep.subr.bf16.mxu0 0
    %1603 = vmatpush1.bf16.msra.mxu0 %v1581
    %1604 = vmatprep.subr.bf16.mxu0 0
    %1605 = vmatpush2.bf16.msra.mxu0 0
    %1606 = vmatprep.subr.bf16.mxu0 0
    %1607 = vmatpush2.bf16.msra.mxu0 0
    %1608 = vmatprep.subr.bf16.mxu0 0
    %1609 = vmatpush2.bf16.msra.mxu0 0
    %1610 = vmatprep.subr.bf16.mxu0 0
    %1611 = vmatpush2.bf16.msra.mxu0 0
    %1612 = vmatprep.subr.bf16.mxu0 0
    %1613 = vmatpush2.bf16.msra.mxu0 0
    %1614 = vmatprep.subr.bf16.mxu0 0
    %1615 = vmatpush2.bf16.msra.mxu0 0
    %1616 = vmatprep.subr.bf16.mxu0 0
    %1617 = vmatpush2.bf16.msra.mxu0 0
    %1618 = vmatprep.subr.bf16.mxu0 0
    %1619 = vmatpush2.bf16.msra.mxu0 0
    %1620 = vmatprep.mubr.bf16.mxu0 0
    %1621 = vmatmul.mubr.bf16.gmra.mxu0 %v1586
    %v1622 = vpop.f32.mrf.mxu0
    %v1623 = vadd.f32 %v1571, %v1622
    %v1624 = vpop.f32.mrf.mxu0
    %v1625 = vpop.f32.mrf.mxu0
    %v1626 = vadd.f32 %v1571, %v1625
    %v1627 = vpop.f32.mrf.mxu0
    %1628 = vdwg.mxu0
    %v1629 = vmul.f32 %v1623, 0.5
    %v1630 = vmul.f32 %v1626, 0.5
    %v1631 = vmul.f32 %v1623, 0.044715
    %v1632 = vmul.f32 %v1626, 0.044715
    %v1633 = vmul.f32 %v1631, %v1623
    %v1634 = vmul.f32 %v1632, %v1626
    %v1635 = vmul.f32 %v1633, %v1623
    %v1636 = vmul.f32 %v1634, %v1626
    %v1637 = vadd.f32 %v1623, %v1635
    %v1638 = vadd.f32 %v1626, %v1636
    %v1639 = vmul.f32 %v1637, 0.7978846
    %v1640 = vmul.f32 %v1638, 0.7978846
    %v1641 = vtanh.pop %v1639
    %v1642 = vtanh.pop %v1640
    %v1643 = vadd.f32 %v1641, 1.0
    %v1644 = vadd.f32 %v1642, 1.0
    %v1645 = vmul.f32 %v1629, %v1643
    %v1646 = vmul.f32 %v1630, %v1644
    %v1647 = vpack.c.bf16 %v1646, %v1645
    %s1648 = scalar_lea.vmem %s18, 32
    %v1649 = vld [vmem:[%s1648] sm:$0xf]
    %v1650 = vld [vmem:[%s1648 + $0x4] sm:$0xf]
    %v1651 = vld [vmem:[%s1648 + $0x8] sm:$0xf]
    %v1652 = vld [vmem:[%s1648 + $0xc] sm:$0xf]
    %v1653 = vld [vmem:[%s1648 + $0x10] sm:$0xf]
    %v1654 = vld [vmem:[%s1648 + $0x14] sm:$0xf]
    %v1655 = vld [vmem:[%s1648 + $0x18] sm:$0xf]
    %v1656 = vld [vmem:[%s1648 + $0x1c] sm:$0xf]
    %s1657 = scalar_lea.vmem %s19, 1
    %v1658 = vld [vmem:[%s1657] sm:$0x1]
    %v1660 = vlaneseq
    %v1661 = vshrl.u32 %v1660, 7
    %v1662 = vsub.s32 0, %v1661
    %v1663 = vrot.slane %v1658, %v1662
    %v1673 = vunpack.c.l.b16 %v1649
    %v1674 = vunpack.c.l.b16 %v1650
    %v1675 = vunpack.c.l.b16 %v1651
    %v1676 = vunpack.c.l.b16 %v1652
    %v1677 = vunpack.c.l.b16 %v1653
    %v1678 = vunpack.c.l.b16 %v1654
    %v1679 = vunpack.c.l.b16 %v1655
    %v1680 = vunpack.c.l.b16 %v1656
    %v1681 = vpack.c.b16 %v1674, %v1673
    %v1682 = vpack.c.b16 %v1676, %v1675
    %v1683 = vpack.c.b16 %v1678, %v1677
    %v1684 = vpack.c.b16 %v1680, %v1679
    %v1690 = vsel %vm982, %v1647, 0
    %1692 = vmatprep.subr.bf16.mxu0 0
    %1693 = vmatpush1.bf16.msra.mxu0 0
    %1694 = vmatprep.subr.bf16.mxu0 0
    %1695 = vmatpush1.bf16.msra.mxu0 0
    %1696 = vmatprep.subr.bf16.mxu0 0
    %1697 = vmatpush1.bf16.msra.mxu0 0
    %1698 = vmatprep.subr.bf16.mxu0 0
    %1699 = vmatpush1.bf16.msra.mxu0 0
    %1700 = vmatprep.subr.bf16.mxu0 0
    %1701 = vmatpush1.bf16.msra.mxu0 %v1684
    %1702 = vmatprep.subr.bf16.mxu0 0
    %1703 = vmatpush1.bf16.msra.mxu0 %v1683
    %1704 = vmatprep.subr.bf16.mxu0 0
    %1705 = vmatpush1.bf16.msra.mxu0 %v1682
    %1706 = vmatprep.subr.bf16.mxu0 0
    %1707 = vmatpush1.bf16.msra.mxu0 %v1681
    %1708 = vmatprep.subr.bf16.mxu0 0
    %1709 = vmatpush2.bf16.msra.mxu0 0
    %1710 = vmatprep.subr.bf16.mxu0 0
    %1711 = vmatpush2.bf16.msra.mxu0 0
    %1712 = vmatprep.subr.bf16.mxu0 0
    %1713 = vmatpush2.bf16.msra.mxu0 0
    %1714 = vmatprep.subr.bf16.mxu0 0
    %1715 = vmatpush2.bf16.msra.mxu0 0
    %1716 = vmatprep.subr.bf16.mxu0 0
    %1717 = vmatpush2.bf16.msra.mxu0 0
    %1718 = vmatprep.subr.bf16.mxu0 0
    %1719 = vmatpush2.bf16.msra.mxu0 0
    %1720 = vmatprep.subr.bf16.mxu0 0
    %1721 = vmatpush2.bf16.msra.mxu0 0
    %1722 = vmatprep.subr.bf16.mxu0 0
    %1723 = vmatpush2.bf16.msra.mxu0 0
    %1724 = vmatprep.mubr.bf16.mxu0 0
    %1725 = vmatmul.mubr.bf16.gmra.mxu0 %v1690
    %v1726 = vpop.f32.mrf.mxu0
    %v1727 = vadd.f32 %v1663, %v1726
    %v1728 = vpop.f32.mrf.mxu0
    %v1729 = vpop.f32.mrf.mxu0
    %v1730 = vadd.f32 %v1663, %v1729
    %v1731 = vpop.f32.mrf.mxu0
    %1732 = vdwg.mxu0
    %v1733 = vadd.f32 %v1557, %v1727
    %v1734 = vadd.f32 %v1558, %v1730
    %s1735 = scalar_lea.vmem %s20, 1
    %v1736 = vld [vmem:[%s1735] sm:$0x1]
    %s1737 = scalar_lea.vmem %s21, 1
    %v1738 = vld [vmem:[%s1737] sm:$0x1]
    %v1739 = vsel %vm305, %v1733, 0.0
    %1740 = vadd.xlane.f32.xlu0 %v1739
    %v1741 = vpop.xlane.xlu0 %1740
    %v1742 = vsel %vm305, %v1734, 0.0
    %1743 = vadd.xlane.f32.xlu0 %v1742
    %v1744 = vpop.xlane.xlu0 %1743
    %v1745 = vmul.f32 %v1741, %v312
    %v1746 = vmul.f32 %v1744, %v312
    %v1747 = vsub.f32 %v1733, %v1745
    %v1748 = vsub.f32 %v1734, %v1746
    %v1749 = vmul.f32 %v1747, %v1747
    %v1750 = vmul.f32 %v1748, %v1748
    %v1751 = vsel %vm305, %v1749, 0.0
    %1752 = vadd.xlane.f32.xlu0 %v1751
    %v1753 = vpop.xlane.xlu0 %1752
    %v1754 = vsel %vm305, %v1750, 0.0
    %1755 = vadd.xlane.f32.xlu0 %v1754
    %v1756 = vpop.xlane.xlu0 %1755
    %v1757 = vmul.f32 %v1753, %v312
    %v1758 = vmul.f32 %v1756, %v312
    %v1759 = vadd.f32 %v1757, 1e-12
    %v1760 = vadd.f32 %v1758, 1e-12
    %v1761 = vrsqrt.pop %v1759
    %v1762 = vrsqrt.pop %v1760
    %v1763 = vmul.f32 %v1747, %v1761
    %v1764 = vmul.f32 %v1748, %v1762
    %v1766 = vlaneseq
    %v1767 = vshrl.u32 %v1766, 7
    %v1768 = vsub.s32 0, %v1767
    %v1769 = vrot.slane %v1736, %v1768
    %v1771 = vmul.f32 %v1763, %v1769
    %v1772 = vmul.f32 %v1764, %v1769
    %v1774 = vlaneseq
    %v1775 = vshrl.u32 %v1774, 7
    %v1776 = vsub.s32 0, %v1775
    %v1777 = vrot.slane %v1738, %v1776
    %v1779 = vadd.f32 %v1771, %v1777
    %v1780 = vadd.f32 %v1772, %v1777
    %v1781 = vpack.c.bf16 %v1780, %v1779
    %v1782 = vld [vmem:[%s22] sm:$0xf]
    %v1783 = vld [vmem:[%s22 + $0x4] sm:$0xf]
    %v1784 = vld [vmem:[%s22 + $0x8] sm:$0xf]
    %v1785 = vld [vmem:[%s22 + $0xc] sm:$0xf]
    %v1786 = vld [vmem:[#allocation2] sm:$0x1]
    %v1788 = vlaneseq
    %v1789 = vshrl.u32 %v1788, 7
    %v1790 = vsub.s32 0, %v1789
    %v1791 = vrot.slane %v1786, %v1790
    %v1797 = vunpack.c.l.b16 %v1782
    %v1798 = vunpack.c.l.b16 %v1783
    %v1799 = vunpack.c.l.b16 %v1784
    %v1800 = vunpack.c.l.b16 %v1785
    %v1801 = vpack.c.b16 %v1798, %v1797
    %v1802 = vpack.c.b16 %v1800, %v1799
    %v1806 = vsel %vm305, %v1781, 0
    %1808 = vmatprep.subr.bf16.mxu0 0
    %1809 = vmatpush1.bf16.msra.mxu0 0
    %1810 = vmatprep.subr.bf16.mxu0 0
    %1811 = vmatpush1.bf16.msra.mxu0 0
    %1812 = vmatprep.subr.bf16.mxu0 0
    %1813 = vmatpush1.bf16.msra.mxu0 0
    %1814 = vmatprep.subr.bf16.mxu0 0
    %1815 = vmatpush1.bf16.msra.mxu0 0
    %1816 = vmatprep.subr.bf16.mxu0 0
    %1817 = vmatpush1.bf16.msra.mxu0 0
    %1818 = vmatprep.subr.bf16.mxu0 0
    %1819 = vmatpush1.bf16.msra.mxu0 0
    %1820 = vmatprep.subr.bf16.mxu0 0
    %1821 = vmatpush1.bf16.msra.mxu0 %v1802
    %1822 = vmatprep.subr.bf16.mxu0 0
    %1823 = vmatpush1.bf16.msra.mxu0 %v1801
    %1824 = vmatprep.subr.bf16.mxu0 0
    %1825 = vmatpush2.bf16.msra.mxu0 0
    %1826 = vmatprep.subr.bf16.mxu0 0
    %1827 = vmatpush2.bf16.msra.mxu0 0
    %1828 = vmatprep.subr.bf16.mxu0 0
    %1829 = vmatpush2.bf16.msra.mxu0 0
    %1830 = vmatprep.subr.bf16.mxu0 0
    %1831 = vmatpush2.bf16.msra.mxu0 0
    %1832 = vmatprep.subr.bf16.mxu0 0
    %1833 = vmatpush2.bf16.msra.mxu0 0
    %1834 = vmatprep.subr.bf16.mxu0 0
    %1835 = vmatpush2.bf16.msra.mxu0 0
    %1836 = vmatprep.subr.bf16.mxu0 0
    %1837 = vmatpush2.bf16.msra.mxu0 0
    %1838 = vmatprep.subr.bf16.mxu0 0
    %1839 = vmatpush2.bf16.msra.mxu0 0
    %1840 = vmatprep.mubr.bf16.mxu0 0
    %1841 = vmatmul.mubr.bf16.gmra.mxu0 %v1806
    %v1842 = vpop.f32.mrf.mxu0
    %v1843 = vadd.f32 %v1791, %v1842
    %v1844 = vpop.f32.mrf.mxu0
    %v1845 = vpop.f32.mrf.mxu0
    %v1846 = vadd.f32 %v1791, %v1845
    %v1847 = vpop.f32.mrf.mxu0
    %1848 = vdwg.mxu0
    %1849 = vst [vmem:[%s26] sm:$0xff] %v1843
    %1850 = vst [vmem:[%s26 + $0x8] sm:$0xff] %v1846
    %v1851 = vld [vmem:[%s2] sm:$0xff]
    %v1852 = vld [vmem:[%s2 + $0x8] sm:$0xff]
    %1853 = vmax.xlane.f32.xlu0 %v1843
    %v1854 = vpop.xlane.xlu0 %1853
    %1855 = vmax.xlane.f32.xlu0 %v1846
    %v1856 = vpop.xlane.xlu0 %1855
    %v1857 = vsub.f32 %v1843, %v1854
    %v1858 = vsub.f32 %v1846, %v1856
    %v1859 = vmul.f32 %v1857, 1.442695
    %v1860 = vpow.pop %v1859
    %v1861 = vmul.f32 %v1858, 1.442695
    %v1862 = vpow.pop %v1861
    %1863 = vadd.xlane.f32.xlu0 %v1860
    %v1864 = vpop.xlane.xlu0 %1863
    %1865 = vadd.xlane.f32.xlu0 %v1862
    %v1866 = vpop.xlane.xlu0 %1865
    %v1867 = vlog2.pop %v1864
    %v1868 = vmul.f32 %v1867, 0.6931472
    %v1869 = vlog2.pop %v1866
    %v1870 = vmul.f32 %v1869, 0.6931472
    %v1871 = vadd.f32 %v1854, %v1868
    %v1872 = vadd.f32 %v1856, %v1870
    %1873 = vset.pattern.permute.xlu0 0
    %1874 = vperm.xlu0 %1873, %v1851
    %v1875 = vpop.permute.xlu0 %1874
    %1876 = vset.pattern.permute.xlu0 0
    %1877 = vperm.xlu0 %1876, %v1852
    %v1878 = vpop.permute.xlu0 %1877
    %vm1879 = vcmp.eq.s32.totalorder %v116, %v1875
    %vm1880 = vcmp.eq.s32.totalorder %v116, %v1878
    %v1881 = vsel %vm1879, %v1843, 0.0
    %v1882 = vsel %vm1880, %v1846, 0.0
    %1883 = vadd.xlane.f32.xlu0 %v1881
    %v1884 = vpop.xlane.xlu0 %1883
    %1885 = vadd.xlane.f32.xlu0 %v1882
    %v1886 = vpop.xlane.xlu0 %1885
    %vm1887 = vcmp.ne.s32.totalorder %v1851, 4294967196
    %vm1888 = vcmp.ne.s32.totalorder %v1852, 4294967196
    %v1889 = vsel %vm1887, 1, 0
    %v1890 = vsel %vm1888, 1, 0
    %v1891 = vcvt.s32.f32 %v1889
    %v1892 = vcvt.s32.f32 %v1890
    %v1893 = vsub.f32 %v1871, %v1884
    %v1894 = vsub.f32 %v1872, %v1886
    %v1895 = vmul.f32 %v1893, %v1891
    %v1896 = vmul.f32 %v1894, %v1892
    %vm1897 = vcmask 7168
    %v1898 = vsel %vm1897, %v1895, 0.0
    %v1899 = vsel %vm1897, %v1896, 0.0
    %v1900 = vadd.f32 %v1898, %v1899
    %v1901 = vrot.slane %v1900, 4
    %v1902 = vadd.f32 %v1900, %v1901
    %v1903 = vrot.slane %v1902, 2
    %v1904 = vadd.f32 %v1902, %v1903
    %v1905 = vrot.slane %v1904, 1
    %v1906 = vadd.f32 %v1904, %v1905
    %v1907 = vsel %vm1897, %v1891, 0.0
    %v1908 = vsel %vm1897, %v1892, 0.0
    %v1909 = vadd.f32 %v1907, %v1908
    %v1910 = vrot.slane %v1909, 4
    %v1911 = vadd.f32 %v1909, %v1910
    %v1912 = vrot.slane %v1911, 2
    %v1913 = vadd.f32 %v1911, %v1912
    %v1914 = vrot.slane %v1913, 1
    %v1915 = vadd.f32 %v1913, %v1914
    %v1916 = vmax.f32 %v1915, 1.0
    %v1917 = vrcp.pop %v1916
    %v1918 = vmul.f32 %v1906, %v1917
    %vm1919 = vcmask 0
    %1920 = vst.msk [vmem:[#allocation8] sm:$0x1] %vm1919, %v1918
    %v1921 = vlaneseq
    %v1922 = vshrl.u32 %v1921, 7
    %v1923 = vmul.u32 %v1922, 8
    %vm1924 = vcmp.eq.s32.totalorder %v116, %v1923
    %v1925 = vsel %vm1924, 1, 0
    %v1926 = vcvt.s32.f32 %v1925
    %v1928 = vsel %vm169, %v1926, 0
    %1930 = vmatprep.subr.mxu0 0.0
    %1931 = vmatpush1.msra.mxu0 0.0
    %1932 = vmatprep.subr.mxu0 0.0
    %1933 = vmatpush1.msra.mxu0 0.0
    %1934 = vmatprep.subr.mxu0 0.0
    %1935 = vmatpush1.msra.mxu0 0.0
    %1936 = vmatprep.subr.mxu0 0.0
    %1937 = vmatpush1.msra.mxu0 0.0
    %1938 = vmatprep.subr.mxu0 0.0
    %1939 = vmatpush1.msra.mxu0 0.0
    %1940 = vmatprep.subr.mxu0 0.0
    %1941 = vmatpush1.msra.mxu0 0.0
    %1942 = vmatprep.subr.mxu0 0.0
    %1943 = vmatpush1.msra.mxu0 0.0
    %1944 = vmatprep.subr.mxu0 0.0
    %1945 = vmatpush1.msra.mxu0 0.0
    %1946 = vmatprep.subr.mxu0 0.0
    %1947 = vmatpush1.msra.mxu0 0.0
    %1948 = vmatprep.subr.mxu0 0.0
    %1949 = vmatpush1.msra.mxu0 0.0
    %1950 = vmatprep.subr.mxu0 0.0
    %1951 = vmatpush1.msra.mxu0 0.0
    %1952 = vmatprep.subr.mxu0 0.0
    %1953 = vmatpush1.msra.mxu0 0.0
    %1954 = vmatprep.subr.mxu0 0.0
    %1955 = vmatpush1.msra.mxu0 0.0
    %1956 = vmatprep.subr.mxu0 0.0
    %1957 = vmatpush1.msra.mxu0 0.0
    %1958 = vmatprep.subr.mxu0 0.0
    %1959 = vmatpush1.msra.mxu0 %v1780
    %1960 = vmatprep.subr.mxu0 0.0
    %1961 = vmatpush1.msra.mxu0 %v1779
    %1962 = vmatprep.subr.mxu0 0.0
    %1963 = vmatpush2.msra.mxu0 0.0
    %1964 = vmatprep.subr.mxu0 0.0
    %1965 = vmatpush2.msra.mxu0 0.0
    %1966 = vmatprep.subr.mxu0 0.0
    %1967 = vmatpush2.msra.mxu0 0.0
    %1968 = vmatprep.subr.mxu0 0.0
    %1969 = vmatpush2.msra.mxu0 0.0
    %1970 = vmatprep.subr.mxu0 0.0
    %1971 = vmatpush2.msra.mxu0 0.0
    %1972 = vmatprep.subr.mxu0 0.0
    %1973 = vmatpush2.msra.mxu0 0.0
    %1974 = vmatprep.subr.mxu0 0.0
    %1975 = vmatpush2.msra.mxu0 0.0
    %1976 = vmatprep.subr.mxu0 0.0
    %1977 = vmatpush2.msra.mxu0 0.0
    %1978 = vmatprep.subr.mxu0 0.0
    %1979 = vmatpush2.msra.mxu0 0.0
    %1980 = vmatprep.subr.mxu0 0.0
    %1981 = vmatpush2.msra.mxu0 0.0
    %1982 = vmatprep.subr.mxu0 0.0
    %1983 = vmatpush2.msra.mxu0 0.0
    %1984 = vmatprep.subr.mxu0 0.0
    %1985 = vmatpush2.msra.mxu0 0.0
    %1986 = vmatprep.subr.mxu0 0.0
    %1987 = vmatpush2.msra.mxu0 0.0
    %1988 = vmatprep.subr.mxu0 0.0
    %1989 = vmatpush2.msra.mxu0 0.0
    %1990 = vmatprep.subr.mxu0 0.0
    %1991 = vmatpush2.msra.mxu0 0.0
    %1992 = vmatprep.subr.mxu0 0.0
    %1993 = vmatpush2.msra.mxu0 0.0
    %1994 = vmatprep.mubr.f32.mxu0 0.0
    %1995 = vmatmul.mubr.f32.gmra.mxu0 %v1928
    %v1996 = vpop.f32.mrf.mxu0
    %v1997 = vadd.f32 0.0, %v1996
    %v1998 = vpop.f32.mrf.mxu0
    %1999 = vdwg.mxu0
    %v2000 = vpack.c.bf16 %v1997, %v1997
    %v2001 = vld [vmem:[%s24] sm:$0xf]
    %v2002 = vld [vmem:[%s24 + $0x4] sm:$0xf]
    %v2003 = vld [vmem:[%s24 + $0x8] sm:$0xf]
    %v2004 = vld [vmem:[%s24 + $0xc] sm:$0xf]
    %v2005 = vld [vmem:[#allocation5] sm:$0x1]
    %v2007 = vlaneseq
    %v2008 = vshrl.u32 %v2007, 7
    %v2009 = vsub.s32 0, %v2008
    %v2010 = vrot.slane %v2005, %v2009
    %v2016 = vunpack.c.l.b16 %v2001
    %v2017 = vunpack.c.l.b16 %v2002
    %v2018 = vunpack.c.l.b16 %v2003
    %v2019 = vunpack.c.l.b16 %v2004
    %v2020 = vpack.c.b16 %v2017, %v2016
    %v2021 = vpack.c.b16 %v2019, %v2018
    %v2025 = vsel %vm305, %v2000, 0
    %2027 = vmatprep.subr.bf16.mxu0 0
    %2028 = vmatpush1.bf16.msra.mxu0 0
    %2029 = vmatprep.subr.bf16.mxu0 0
    %2030 = vmatpush1.bf16.msra.mxu0 0
    %2031 = vmatprep.subr.bf16.mxu0 0
    %2032 = vmatpush1.bf16.msra.mxu0 0
    %2033 = vmatprep.subr.bf16.mxu0 0
    %2034 = vmatpush1.bf16.msra.mxu0 0
    %2035 = vmatprep.subr.bf16.mxu0 0
    %2036 = vmatpush1.bf16.msra.mxu0 0
    %2037 = vmatprep.subr.bf16.mxu0 0
    %2038 = vmatpush1.bf16.msra.mxu0 0
    %2039 = vmatprep.subr.bf16.mxu0 0
    %2040 = vmatpush1.bf16.msra.mxu0 %v2021
    %2041 = vmatprep.subr.bf16.mxu0 0
    %2042 = vmatpush1.bf16.msra.mxu0 %v2020
    %2043 = vmatprep.subr.bf16.mxu0 0
    %2044 = vmatpush2.bf16.msra.mxu0 0
    %2045 = vmatprep.subr.bf16.mxu0 0
    %2046 = vmatpush2.bf16.msra.mxu0 0
    %2047 = vmatprep.subr.bf16.mxu0 0
    %2048 = vmatpush2.bf16.msra.mxu0 0
    %2049 = vmatprep.subr.bf16.mxu0 0
    %2050 = vmatpush2.bf16.msra.mxu0 0
    %2051 = vmatprep.subr.bf16.mxu0 0
    %2052 = vmatpush2.bf16.msra.mxu0 0
    %2053 = vmatprep.subr.bf16.mxu0 0
    %2054 = vmatpush2.bf16.msra.mxu0 0
    %2055 = vmatprep.subr.bf16.mxu0 0
    %2056 = vmatpush2.bf16.msra.mxu0 0
    %2057 = vmatprep.subr.bf16.mxu0 0
    %2058 = vmatpush2.bf16.msra.mxu0 0
    %2059 = vmatprep.mubr.bf16.mxu0 0
    %2060 = vmatmul.mubr.bf16.gmra.mxu0 %v2025
    %v2061 = vpop.f32.mrf.mxu0
    %v2062 = vadd.f32 %v2010, %v2061
    %v2063 = vpop.f32.mrf.mxu0
    %v2064 = vpop.f32.mrf.mxu0
    %v2065 = vpop.f32.mrf.mxu0
    %2066 = vdwg.mxu0
    %2067 = vst [vmem:[#allocation7] sm:$0x3] %v2062
    // Predicated region
    $region114: #{joint_atis_forward.1} parent=1 // pred_check
      _
    $region115: #{joint_atis_forward.1} parent=1 // pred_check_branch
      %2069 = sbr.rel (0) target = $region117
    $region116: #{joint_atis_forward.1} parent=1 // pred_region
      _
    $region117: #{joint_atis_forward.1} parent=1 // pred_fallthru
      _
    // Predicated region
    $region118: #{joint_atis_forward.1} parent=1 // pred_check
      _
    $region119: #{joint_atis_forward.1} parent=1 // pred_check_branch
      %2071 = sbr.rel (0) target = $region121
    $region120: #{joint_atis_forward.1} parent=1 // pred_region
      %s2073 = ssub.s32 32, 32
      %2074 = vsyncadd [#allocation4], %s2073
      %s2076 = sshll.u32 [#allocation7], 4
      %s2077 = int_to_ptr.vmem [resolvable:$true] %s2076
      %2079 = dma.vmem_to_hbm [thread:$0]  %s2077, 32, %s27, [#allocation4]
    $region121: #{joint_atis_forward.1} parent=1 // pred_fallthru
      _
    // Predicated region
    $region122: #{joint_atis_forward.1} parent=1 // pred_check
      _
    $region123: #{joint_atis_forward.1} parent=1 // pred_check_branch
      %2081 = sbr.rel (0) target = $region125
    $region124: #{joint_atis_forward.1} parent=1 // pred_region
      %s2083 = ssub.s32 16, 16
      %2084 = vsyncadd [#allocation9], %s2083
      %s2086 = sshll.u32 [#allocation8], 4
      %s2087 = int_to_ptr.vmem [resolvable:$true] %s2086
      %2089 = dma.vmem_to_hbm [thread:$0]  %s2087, 16, %s28, [#allocation9]
    $region125: #{joint_atis_forward.1} parent=1 // pred_fallthru
      _
    // Predicated region
    $region126: #{joint_atis_forward.1} parent=1 // pred_check
      _
    $region127: #{joint_atis_forward.1} parent=1 // pred_check_branch
      %2091 = sbr.rel (0) target = $region129
    $region128: #{joint_atis_forward.1} parent=1 // pred_region
      _
    $region129: #{joint_atis_forward.1} parent=1 // pred_fallthru
      _
    // Predicated region
    $region130: #{joint_atis_forward.1} parent=1 // pred_check
      _
    $region131: #{joint_atis_forward.1} parent=1 // pred_check_branch
      %2093 = sbr.rel (0) target = $region133
    $region132: #{joint_atis_forward.1} parent=1 // pred_region
      %2094 = dma.done [#allocation4], 32
    $region133: #{joint_atis_forward.1} parent=1 // pred_fallthru
      _
    // Predicated region
    $region134: #{joint_atis_forward.1} parent=1 // pred_check
      _
    $region135: #{joint_atis_forward.1} parent=1 // pred_check_branch
      %2096 = sbr.rel (0) target = $region137
    $region136: #{joint_atis_forward.1} parent=1 // pred_region
      %2097 = dma.done [#allocation9], 16
    $region137: #{joint_atis_forward.1} parent=1 // pred_fallthru
      _
    %2098 = vsyncpa [#allocation3], 1
    %2099 = vsyncpa [#allocation6], 1
    %2100 = vsyncpa [#allocation4], 1
    %2101 = vsyncpa [#allocation9], 1

</llo_original>
